<compile_context>
chip_gen: v7x
topology: tpu7x:2x2x1
jax: 0.10.0
libtpu: 0.0.40
codegen_flags: <defaults>
</compile_context>

<pallas_src>
import math

import jax
import jax.numpy as jnp
from jax import lax
from jax.experimental import pallas as pl
from jax.experimental.pallas import tpu as pltpu

# small, config-consistent synthetic sizes
B = 2             # batch
S = 8             # sequence length
H = 32            # config.hidden_size
NUM_HEADS = 4     # config.num_attention_heads
HEAD_DIM = H // NUM_HEADS
LN_EPS = 1e-12


def _bert_attention_kernel(x_ref,      # (B*S, H)  f32   flattened activations
                           mask_ref,   # (B, S)    f32   additive attention mask
                           wqkv_ref,   # (H, 3H)   bf16  fused QKV weights (Q pre-scaled)
                           bqkv_ref,   # (1, 3H)   f32   fused QKV bias   (Q pre-scaled)
                           wo_ref,     # (H, H)    bf16  output projection weight
                           ln_ref,     # (3, H)    f32   packed [bo; gamma; beta]
                           out_ref,    # (B*S, H)
                           ctx_ref):   # (B*S, H)  f32   VMEM scratch for per-head contexts
    x_f32 = x_ref[...].astype(jnp.float32)          # residual / LayerNorm path in f32
    x_bf = x_f32.astype(jnp.bfloat16)               # MXU operand in bf16

    # ---- fused QKV projection: ONE lane-dense (B*S, H)@(H, 3H) matmul, f32 acc ----
    qkv = jnp.dot(x_bf, wqkv_ref[...],
                  preferred_element_type=jnp.float32) + bqkv_ref[...]   # (B*S, 3H) f32
    qkv_bf = qkv.astype(jnp.bfloat16)                # single full-width cast (hoisted)

    mask = mask_ref[...]                             # (B, S) additive mask, loaded once

    # ---- per-(batch, head) attention, contexts written into VMEM scratch slices ----
    # B*NUM_HEADS = 8 tiny iterations -> static unroll with static (vreg-friendly)
    # slices; no jnp.concatenate at the end.
    # TODO(synk): at production sizes (nH=16, S=512) switch to lax.fori_loop or a
    #             head grid axis to bound live ranges instead of this static unroll.
    for b in range(B):
        r0 = b * S
        mask_b = mask[b:b + 1, :]                    # (1, S), hoisted per batch
        for h in range(NUM_HEADS):
            c0 = h * HEAD_DIM
            q_h = qkv_bf[r0:r0 + S, c0:c0 + HEAD_DIM]                      # pre-scaled by 1/sqrt(dH)
            k_h = qkv_bf[r0:r0 + S, H + c0:H + c0 + HEAD_DIM]
            v_h = qkv_bf[r0:r0 + S, 2 * H + c0:2 * H + c0 + HEAD_DIM]

            # scores without a K transpose: contract the dH axis of both operands
            s = lax.dot_general(q_h, k_h, (((1,), (1,)), ((), ())),
                                preferred_element_type=jnp.float32)        # (S, S) f32
            s = s + mask_b                                                 # broadcast over rows
            m = jnp.max(s, axis=-1, keepdims=True)
            p = jnp.exp(s - m)
            l = jnp.sum(p, axis=-1, keepdims=True)
            # attention dropout: eval mode -> identity
            ctx_h = jnp.dot(p.astype(jnp.bfloat16), v_h,
                            preferred_element_type=jnp.float32)            # (S, dH) f32
            # deferred softmax normalization on the (S, dH) context (EUP reciprocal)
            ctx_ref[r0:r0 + S, c0:c0 + HEAD_DIM] = ctx_h * pl.reciprocal(l, approx=True)

    # ---- fused output projection (BertSelfOutput.dense): ONE (B*S, H)@(H, H) matmul ----
    proj = jnp.dot(ctx_ref[...].astype(jnp.bfloat16), wo_ref[...],
                   preferred_element_type=jnp.float32) + ln_ref[0:1, :]    # + bo

    # ---- dropout(identity in eval) + residual + LayerNorm (f32) ----
    hidden = proj + x_f32
    mean = jnp.mean(hidden, axis=-1, keepdims=True)
    centered = hidden - mean
    var = jnp.mean(centered * centered, axis=-1, keepdims=True)
    normed = centered * lax.rsqrt(var + LN_EPS)
    out_ref[...] = (normed * ln_ref[1:2, :] + ln_ref[2:3, :]).astype(out_ref.dtype)


def bert_attention(input_tensor, attention_mask, params):
    """input_tensor (B,S,H) f32, attention_mask (B,S) additive f32, params packed."""
    Bv, Sv, Hv = input_tensor.shape
    x2d = input_tensor.reshape(Bv * Sv, Hv)          # free row-major reshape
    zero2 = lambda i: (0, 0)                         # single-step grid, whole-array blocks

    out2d = pl.pallas_call(
        _bert_attention_kernel,
        out_shape=jax.ShapeDtypeStruct((Bv * Sv, Hv), input_tensor.dtype),
        grid_spec=pltpu.PrefetchScalarGridSpec(
            num_scalar_prefetch=0,
            grid=(1,),                               # batch grid collapsed into one block
            in_specs=[
                pl.BlockSpec((Bv * Sv, Hv), zero2),  # x (flattened B*S rows)
                pl.BlockSpec((Bv, Sv), zero2),       # additive mask
                pl.BlockSpec((Hv, 3 * Hv), zero2),   # Wqkv (bf16, Q pre-scaled)
                pl.BlockSpec((1, 3 * Hv), zero2),    # bqkv
                pl.BlockSpec((Hv, Hv), zero2),       # Wo (bf16)
                pl.BlockSpec((3, Hv), zero2),        # packed [bo; gamma; beta]
            ],
            out_specs=pl.BlockSpec((Bv * Sv, Hv), zero2),
            scratch_shapes=[pltpu.VMEM((Bv * Sv, Hv), jnp.float32)],   # ctx scratch
        ),
        # single grid step: nothing to shard; at production sizes add a "parallel"
        # S-tile / batch axis so v7x's second TensorCore is fed.
        compiler_params=pltpu.CompilerParams(
            dimension_semantics=("arbitrary",)),
    )(x2d, attention_mask, params["wqkv"], params["bqkv"], params["wo"], params["ln"])

    return out2d.reshape(Bv, Sv, Hv)


def pack_params(wq, wk, wv, bq, bk, bv, wo, bo, gamma, beta):
    """Host-side packing: fuse QKV, fold 1/sqrt(dH) into the Q block, cast weights
    to bf16, and pack the small LayerNorm/output-bias vectors into one array."""
    scale = 1.0 / math.sqrt(HEAD_DIM)
    wqkv = jnp.concatenate([wq * scale, wk, wv], axis=-1)            # (H, 3H)
    bqkv = jnp.concatenate([bq * scale, bk, bv], axis=-1)[None, :]   # (1, 3H)
    ln = jnp.stack([bo, gamma, beta], axis=0)                        # (3, H)
    return {
        "wqkv": wqkv.astype(jnp.bfloat16),
        "bqkv": bqkv.astype(jnp.float32),
        "wo": wo.astype(jnp.bfloat16),
        "ln": ln.astype(jnp.float32),
    }


def reference_forward(x, mask, wq, wk, wv, bq, bk, bv, wo, bo, gamma, beta):
    """Pure-JAX f32 reference with the same eval-mode semantics as BertAttention."""
    Bv, Sv, Hv = x.shape

    def split_heads(t):  # (B,S,H) -> (B,nH,S,dH)
        return t.reshape(Bv, Sv, NUM_HEADS, HEAD_DIM).transpose(0, 2, 1, 3)

    q = split_heads(x @ wq + bq)
    k = split_heads(x @ wk + bk)
    v = split_heads(x @ wv + bv)
    s = jnp.einsum("bnsd,bntd->bnst", q, k) / math.sqrt(HEAD_DIM)
    s = s + mask[:, None, None, :]                   # (B,1,1,S) additive, as in the module
    probs = jax.nn.softmax(s, axis=-1)
    ctx = jnp.einsum("bnst,bntd->bnsd", probs, v)
    ctx = ctx.transpose(0, 2, 1, 3).reshape(Bv, Sv, Hv)
    proj = ctx @ wo + bo
    hidden = proj + x
    mean = jnp.mean(hidden, axis=-1, keepdims=True)
    var = jnp.mean((hidden - mean) ** 2, axis=-1, keepdims=True)
    normed = (hidden - mean) * lax.rsqrt(var + LN_EPS)
    return normed * gamma + beta


if __name__ == "__main__":
    key = jax.random.PRNGKey(0)
    ks = jax.random.split(key, 10)

    # master weights in f32 (nn.Linear weight.T layout: (in, out), heads contiguous per dH cols)
    wq = jax.random.normal(ks[0], (H, H), jnp.float32) * 0.05
    wk = jax.random.normal(ks[1], (H, H), jnp.float32) * 0.05
    wv = jax.random.normal(ks[2], (H, H), jnp.float32) * 0.05
    bq = jax.random.normal(ks[3], (H,), jnp.float32) * 0.01
    bk = jax.random.normal(ks[4], (H,), jnp.float32) * 0.01
    bv = jax.random.normal(ks[5], (H,), jnp.float32) * 0.01
    wo = jax.random.normal(ks[6], (H, H), jnp.float32) * 0.05
    bo = jax.random.normal(ks[7], (H,), jnp.float32) * 0.01
    gamma = jnp.ones((H,), jnp.float32)
    beta = jnp.zeros((H,), jnp.float32)

    input_tensor = jax.random.normal(ks[8], (B, S, H), jnp.float32)

    # standard BERT additive mask: 0 for valid tokens, -10000 for padding, shape (B, S)
    seqlens = jnp.array([6, 8], dtype=jnp.int32)
    valid = jnp.arange(S)[None, :] < seqlens[:, None]                 # (B, S)
    attention_mask = jnp.where(valid, 0.0, -10000.0).astype(jnp.float32)

    params = pack_params(wq, wk, wv, bq, bk, bv, wo, bo, gamma, beta)

    out = bert_attention(input_tensor, attention_mask, params)
    out = jax.block_until_ready(out)

    # reference uses the same bf16-rounded weights (cast back to f32) so the only
    # precision gap is the kernel's bf16 MXU operands / approx reciprocal.
    wq_r = (wq.astype(jnp.bfloat16)).astype(jnp.float32)
    wk_r = (wk.astype(jnp.bfloat16)).astype(jnp.float32)
    wv_r = (wv.astype(jnp.bfloat16)).astype(jnp.float32)
    wo_r = (wo.astype(jnp.bfloat16)).astype(jnp.float32)
    ref = reference_forward(input_tensor, attention_mask,
                            wq_r, wk_r, wv_r, bq, bk, bv, wo_r, bo, gamma, beta)

    assert out.shape == input_tensor.shape
    max_err = jnp.max(jnp.abs(out - ref))
    assert jnp.allclose(out, ref, atol=2e-2, rtol=2e-2), f"max abs err {max_err}"

    print("KERNEL_OK")
</pallas_src>

<mosaic_0001>
module attributes {stable_mosaic.version = 11 : i64} {
  func.func @_bert_attention_kernel(%arg0: i32, %arg1: memref<16x32xf32, #tpu.memory_space<vmem>>, %arg2: memref<2x8xf32, #tpu.memory_space<vmem>>, %arg3: memref<32x96xbf16, #tpu.memory_space<vmem>>, %arg4: memref<1x96xf32, #tpu.memory_space<vmem>>, %arg5: memref<32x32xbf16, #tpu.memory_space<vmem>>, %arg6: memref<3x32xf32, #tpu.memory_space<vmem>>, %arg7: memref<16x32xf32, #tpu.memory_space<vmem>>, %arg8: memref<16x32xf32, #tpu.memory_space<vmem>>) attributes {dimension_semantics = [#tpu.dimension_semantics<arbitrary>], iteration_bounds = array<i64: 1>, scalar_prefetch = 0 : i64, scratch_operands = 1 : i64, tpu.core_type = #tpu.core_type<tc>, window_params = [{pipeline_mode = #tpu.pipeline_mode<synchronous>, transform_indices = @transform_0, window_bounds = array<i64: 16, 32>}, {pipeline_mode = #tpu.pipeline_mode<synchronous>, transform_indices = @transform_1, window_bounds = array<i64: 2, 8>}, {pipeline_mode = #tpu.pipeline_mode<synchronous>, transform_indices = @transform_2, window_bounds = array<i64: 32, 96>}, {pipeline_mode = #tpu.pipeline_mode<synchronous>, transform_indices = @transform_3, window_bounds = array<i64: 1, 96>}, {pipeline_mode = #tpu.pipeline_mode<synchronous>, transform_indices = @transform_4, window_bounds = array<i64: 32, 32>}, {pipeline_mode = #tpu.pipeline_mode<synchronous>, transform_indices = @transform_5, window_bounds = array<i64: 3, 32>}, {pipeline_mode = #tpu.pipeline_mode<synchronous>, transform_indices = @transform_6, window_bounds = array<i64: 16, 32>}]} {
    %c0 = arith.constant 0 : index
    %c0_0 = arith.constant 0 : index
    %0 = vector.load %arg1[%c0, %c0_0] : memref<16x32xf32, #tpu.memory_space<vmem>>, vector<16x32xf32>
    %1 = arith.truncf %0 : vector<16x32xf32> to vector<16x32xbf16>
    %c0_1 = arith.constant 0 : index
    %c0_2 = arith.constant 0 : index
    %2 = vector.load %arg3[%c0_1, %c0_2] : memref<32x96xbf16, #tpu.memory_space<vmem>>, vector<32x96xbf16>
    %cst = arith.constant dense<0.000000e+00> : vector<16x96xf32>
    %3 = tpu.matmul %1, %2, %cst {dimension_numbers = #tpu.dot_dimension_numbers<[1], [0], [0], [1], [0, 0, 1, 1], [], []>} : vector<16x32xbf16>, vector<32x96xbf16>, vector<16x96xf32> -> vector<16x96xf32>
    %c0_3 = arith.constant 0 : index
    %c0_4 = arith.constant 0 : index
    %4 = vector.load %arg4[%c0_3, %c0_4] : memref<1x96xf32, #tpu.memory_space<vmem>>, vector<1x96xf32>
    %5 = vector.broadcast %4 : vector<1x96xf32> to vector<16x96xf32>
    %6 = arith.addf %3, %5 : vector<16x96xf32>
    %7 = arith.truncf %6 : vector<16x96xf32> to vector<16x96xbf16>
    %c0_5 = arith.constant 0 : index
    %c0_6 = arith.constant 0 : index
    %8 = vector.load %arg2[%c0_5, %c0_6] : memref<2x8xf32, #tpu.memory_space<vmem>>, vector<2x8xf32>
    %9 = vector.extract_strided_slice %8 {offsets = [0, 0], sizes = [1, 8], strides = [1, 1]} : vector<2x8xf32> to vector<1x8xf32>
    %10 = vector.extract_strided_slice %7 {offsets = [0, 0], sizes = [8, 8], strides = [1, 1]} : vector<16x96xbf16> to vector<8x8xbf16>
    %11 = vector.extract_strided_slice %7 {offsets = [0, 32], sizes = [8, 8], strides = [1, 1]} : vector<16x96xbf16> to vector<8x8xbf16>
    %12 = vector.extract_strided_slice %7 {offsets = [0, 64], sizes = [8, 8], strides = [1, 1]} : vector<16x96xbf16> to vector<8x8xbf16>
    %cst_7 = arith.constant dense<0.000000e+00> : vector<8x8xf32>
    %13 = tpu.matmul %10, %11, %cst_7 {dimension_numbers = #tpu.dot_dimension_numbers<[1], [1], [0], [0], [0, 0, 1, 0], [], []>} : vector<8x8xbf16>, vector<8x8xbf16>, vector<8x8xf32> -> vector<8x8xf32>
    %14 = vector.broadcast %9 : vector<1x8xf32> to vector<8x8xf32>
    %15 = arith.addf %13, %14 : vector<8x8xf32>
    %cst_8 = arith.constant dense<0xFF800000> : vector<8xf32>
    %16 = vector.multi_reduction <maximumf>, %15, %cst_8 [1] : vector<8x8xf32> to vector<8xf32>
    %17 = vector.shape_cast %16 : vector<8xf32> to vector<8x1xf32>
    %18 = vector.broadcast %17 : vector<8x1xf32> to vector<8x8xf32>
    %19 = arith.subf %15, %18 : vector<8x8xf32>
    %20 = math.exp %19 : vector<8x8xf32>
    %cst_9 = arith.constant dense<0.000000e+00> : vector<8xf32>
    %21 = vector.multi_reduction <add>, %20, %cst_9 [1] : vector<8x8xf32> to vector<8xf32>
    %22 = vector.shape_cast %21 : vector<8xf32> to vector<8x1xf32>
    %23 = arith.truncf %20 : vector<8x8xf32> to vector<8x8xbf16>
    %cst_10 = arith.constant dense<0.000000e+00> : vector<8x8xf32>
    %24 = tpu.matmul %23, %12, %cst_10 {dimension_numbers = #tpu.dot_dimension_numbers<[1], [0], [0], [1], [0, 0, 1, 1], [], []>} : vector<8x8xbf16>, vector<8x8xbf16>, vector<8x8xf32> -> vector<8x8xf32>
    %25 = tpu.reciprocal %22 {approx = true} : vector<8x1xf32> -> vector<8x1xf32>
    %26 = vector.broadcast %25 : vector<8x1xf32> to vector<8x8xf32>
    %27 = arith.mulf %24, %26 : vector<8x8xf32>
    %c0_11 = arith.constant 0 : index
    %c0_12 = arith.constant 0 : index
    %28 = vector.load %arg8[%c0_11, %c0_12] : memref<16x32xf32, #tpu.memory_space<vmem>>, vector<8x8xf32>
    tpu.vector_store %arg8[%c0_11, %c0_12], %27 {strides = array<i32>} : memref<16x32xf32, #tpu.memory_space<vmem>>, vector<8x8xf32>,
    %29 = vector.extract_strided_slice %7 {offsets = [0, 8], sizes = [8, 8], strides = [1, 1]} : vector<16x96xbf16> to vector<8x8xbf16>
    %30 = vector.extract_strided_slice %7 {offsets = [0, 40], sizes = [8, 8], strides = [1, 1]} : vector<16x96xbf16> to vector<8x8xbf16>
    %31 = vector.extract_strided_slice %7 {offsets = [0, 72], sizes = [8, 8], strides = [1, 1]} : vector<16x96xbf16> to vector<8x8xbf16>
    %cst_13 = arith.constant dense<0.000000e+00> : vector<8x8xf32>
    %32 = tpu.matmul %29, %30, %cst_13 {dimension_numbers = #tpu.dot_dimension_numbers<[1], [1], [0], [0], [0, 0, 1, 0], [], []>} : vector<8x8xbf16>, vector<8x8xbf16>, vector<8x8xf32> -> vector<8x8xf32>
    %33 = vector.broadcast %9 : vector<1x8xf32> to vector<8x8xf32>
    %34 = arith.addf %32, %33 : vector<8x8xf32>
    %cst_14 = arith.constant dense<0xFF800000> : vector<8xf32>
    %35 = vector.multi_reduction <maximumf>, %34, %cst_14 [1] : vector<8x8xf32> to vector<8xf32>
    %36 = vector.shape_cast %35 : vector<8xf32> to vector<8x1xf32>
    %37 = vector.broadcast %36 : vector<8x1xf32> to vector<8x8xf32>
    %38 = arith.subf %34, %37 : vector<8x8xf32>
    %39 = math.exp %38 : vector<8x8xf32>
    %cst_15 = arith.constant dense<0.000000e+00> : vector<8xf32>
    %40 = vector.multi_reduction <add>, %39, %cst_15 [1] : vector<8x8xf32> to vector<8xf32>
    %41 = vector.shape_cast %40 : vector<8xf32> to vector<8x1xf32>
    %42 = arith.truncf %39 : vector<8x8xf32> to vector<8x8xbf16>
    %cst_16 = arith.constant dense<0.000000e+00> : vector<8x8xf32>
    %43 = tpu.matmul %42, %31, %cst_16 {dimension_numbers = #tpu.dot_dimension_numbers<[1], [0], [0], [1], [0, 0, 1, 1], [], []>} : vector<8x8xbf16>, vector<8x8xbf16>, vector<8x8xf32> -> vector<8x8xf32>
    %44 = tpu.reciprocal %41 {approx = true} : vector<8x1xf32> -> vector<8x1xf32>
    %45 = vector.broadcast %44 : vector<8x1xf32> to vector<8x8xf32>
    %46 = arith.mulf %43, %45 : vector<8x8xf32>
    %c0_17 = arith.constant 0 : index
    %c8 = arith.constant 8 : index
    %47 = vector.load %arg8[%c0_17, %c8] : memref<16x32xf32, #tpu.memory_space<vmem>>, vector<8x8xf32>
    tpu.vector_store %arg8[%c0_17, %c8], %46 {strides = array<i32>} : memref<16x32xf32, #tpu.memory_space<vmem>>, vector<8x8xf32>,
    %48 = vector.extract_strided_slice %7 {offsets = [0, 16], sizes = [8, 8], strides = [1, 1]} : vector<16x96xbf16> to vector<8x8xbf16>
    %49 = vector.extract_strided_slice %7 {offsets = [0, 48], sizes = [8, 8], strides = [1, 1]} : vector<16x96xbf16> to vector<8x8xbf16>
    %50 = vector.extract_strided_slice %7 {offsets = [0, 80], sizes = [8, 8], strides = [1, 1]} : vector<16x96xbf16> to vector<8x8xbf16>
    %cst_18 = arith.constant dense<0.000000e+00> : vector<8x8xf32>
    %51 = tpu.matmul %48, %49, %cst_18 {dimension_numbers = #tpu.dot_dimension_numbers<[1], [1], [0], [0], [0, 0, 1, 0], [], []>} : vector<8x8xbf16>, vector<8x8xbf16>, vector<8x8xf32> -> vector<8x8xf32>
    %52 = vector.broadcast %9 : vector<1x8xf32> to vector<8x8xf32>
    %53 = arith.addf %51, %52 : vector<8x8xf32>
    %cst_19 = arith.constant dense<0xFF800000> : vector<8xf32>
    %54 = vector.multi_reduction <maximumf>, %53, %cst_19 [1] : vector<8x8xf32> to vector<8xf32>
    %55 = vector.shape_cast %54 : vector<8xf32> to vector<8x1xf32>
    %56 = vector.broadcast %55 : vector<8x1xf32> to vector<8x8xf32>
    %57 = arith.subf %53, %56 : vector<8x8xf32>
    %58 = math.exp %57 : vector<8x8xf32>
    %cst_20 = arith.constant dense<0.000000e+00> : vector<8xf32>
    %59 = vector.multi_reduction <add>, %58, %cst_20 [1] : vector<8x8xf32> to vector<8xf32>
    %60 = vector.shape_cast %59 : vector<8xf32> to vector<8x1xf32>
    %61 = arith.truncf %58 : vector<8x8xf32> to vector<8x8xbf16>
    %cst_21 = arith.constant dense<0.000000e+00> : vector<8x8xf32>
    %62 = tpu.matmul %61, %50, %cst_21 {dimension_numbers = #tpu.dot_dimension_numbers<[1], [0], [0], [1], [0, 0, 1, 1], [], []>} : vector<8x8xbf16>, vector<8x8xbf16>, vector<8x8xf32> -> vector<8x8xf32>
    %63 = tpu.reciprocal %60 {approx = true} : vector<8x1xf32> -> vector<8x1xf32>
    %64 = vector.broadcast %63 : vector<8x1xf32> to vector<8x8xf32>
    %65 = arith.mulf %62, %64 : vector<8x8xf32>
    %c0_22 = arith.constant 0 : index
    %c16 = arith.constant 16 : index
    %66 = vector.load %arg8[%c0_22, %c16] : memref<16x32xf32, #tpu.memory_space<vmem>>, vector<8x8xf32>
    tpu.vector_store %arg8[%c0_22, %c16], %65 {strides = array<i32>} : memref<16x32xf32, #tpu.memory_space<vmem>>, vector<8x8xf32>,
    %67 = vector.extract_strided_slice %7 {offsets = [0, 24], sizes = [8, 8], strides = [1, 1]} : vector<16x96xbf16> to vector<8x8xbf16>
    %68 = vector.extract_strided_slice %7 {offsets = [0, 56], sizes = [8, 8], strides = [1, 1]} : vector<16x96xbf16> to vector<8x8xbf16>
    %69 = vector.extract_strided_slice %7 {offsets = [0, 88], sizes = [8, 8], strides = [1, 1]} : vector<16x96xbf16> to vector<8x8xbf16>
    %cst_23 = arith.constant dense<0.000000e+00> : vector<8x8xf32>
    %70 = tpu.matmul %67, %68, %cst_23 {dimension_numbers = #tpu.dot_dimension_numbers<[1], [1], [0], [0], [0, 0, 1, 0], [], []>} : vector<8x8xbf16>, vector<8x8xbf16>, vector<8x8xf32> -> vector<8x8xf32>
    %71 = vector.broadcast %9 : vector<1x8xf32> to vector<8x8xf32>
    %72 = arith.addf %70, %71 : vector<8x8xf32>
    %cst_24 = arith.constant dense<0xFF800000> : vector<8xf32>
    %73 = vector.multi_reduction <maximumf>, %72, %cst_24 [1] : vector<8x8xf32> to vector<8xf32>
    %74 = vector.shape_cast %73 : vector<8xf32> to vector<8x1xf32>
    %75 = vector.broadcast %74 : vector<8x1xf32> to vector<8x8xf32>
    %76 = arith.subf %72, %75 : vector<8x8xf32>
    %77 = math.exp %76 : vector<8x8xf32>
    %cst_25 = arith.constant dense<0.000000e+00> : vector<8xf32>
    %78 = vector.multi_reduction <add>, %77, %cst_25 [1] : vector<8x8xf32> to vector<8xf32>
    %79 = vector.shape_cast %78 : vector<8xf32> to vector<8x1xf32>
    %80 = arith.truncf %77 : vector<8x8xf32> to vector<8x8xbf16>
    %cst_26 = arith.constant dense<0.000000e+00> : vector<8x8xf32>
    %81 = tpu.matmul %80, %69, %cst_26 {dimension_numbers = #tpu.dot_dimension_numbers<[1], [0], [0], [1], [0, 0, 1, 1], [], []>} : vector<8x8xbf16>, vector<8x8xbf16>, vector<8x8xf32> -> vector<8x8xf32>
    %82 = tpu.reciprocal %79 {approx = true} : vector<8x1xf32> -> vector<8x1xf32>
    %83 = vector.broadcast %82 : vector<8x1xf32> to vector<8x8xf32>
    %84 = arith.mulf %81, %83 : vector<8x8xf32>
    %c0_27 = arith.constant 0 : index
    %c24 = arith.constant 24 : index
    %85 = vector.load %arg8[%c0_27, %c24] : memref<16x32xf32, #tpu.memory_space<vmem>>, vector<8x8xf32>
    tpu.vector_store %arg8[%c0_27, %c24], %84 {strides = array<i32>} : memref<16x32xf32, #tpu.memory_space<vmem>>, vector<8x8xf32>,
    %86 = vector.extract_strided_slice %8 {offsets = [1, 0], sizes = [1, 8], strides = [1, 1]} : vector<2x8xf32> to vector<1x8xf32>
    %87 = vector.extract_strided_slice %7 {offsets = [8, 0], sizes = [8, 8], strides = [1, 1]} : vector<16x96xbf16> to vector<8x8xbf16>
    %88 = vector.extract_strided_slice %7 {offsets = [8, 32], sizes = [8, 8], strides = [1, 1]} : vector<16x96xbf16> to vector<8x8xbf16>
    %89 = vector.extract_strided_slice %7 {offsets = [8, 64], sizes = [8, 8], strides = [1, 1]} : vector<16x96xbf16> to vector<8x8xbf16>
    %cst_28 = arith.constant dense<0.000000e+00> : vector<8x8xf32>
    %90 = tpu.matmul %87, %88, %cst_28 {dimension_numbers = #tpu.dot_dimension_numbers<[1], [1], [0], [0], [0, 0, 1, 0], [], []>} : vector<8x8xbf16>, vector<8x8xbf16>, vector<8x8xf32> -> vector<8x8xf32>
    %91 = vector.broadcast %86 : vector<1x8xf32> to vector<8x8xf32>
    %92 = arith.addf %90, %91 : vector<8x8xf32>
    %cst_29 = arith.constant dense<0xFF800000> : vector<8xf32>
    %93 = vector.multi_reduction <maximumf>, %92, %cst_29 [1] : vector<8x8xf32> to vector<8xf32>
    %94 = vector.shape_cast %93 : vector<8xf32> to vector<8x1xf32>
    %95 = vector.broadcast %94 : vector<8x1xf32> to vector<8x8xf32>
    %96 = arith.subf %92, %95 : vector<8x8xf32>
    %97 = math.exp %96 : vector<8x8xf32>
    %cst_30 = arith.constant dense<0.000000e+00> : vector<8xf32>
    %98 = vector.multi_reduction <add>, %97, %cst_30 [1] : vector<8x8xf32> to vector<8xf32>
    %99 = vector.shape_cast %98 : vector<8xf32> to vector<8x1xf32>
    %100 = arith.truncf %97 : vector<8x8xf32> to vector<8x8xbf16>
    %cst_31 = arith.constant dense<0.000000e+00> : vector<8x8xf32>
    %101 = tpu.matmul %100, %89, %cst_31 {dimension_numbers = #tpu.dot_dimension_numbers<[1], [0], [0], [1], [0, 0, 1, 1], [], []>} : vector<8x8xbf16>, vector<8x8xbf16>, vector<8x8xf32> -> vector<8x8xf32>
    %102 = tpu.reciprocal %99 {approx = true} : vector<8x1xf32> -> vector<8x1xf32>
    %103 = vector.broadcast %102 : vector<8x1xf32> to vector<8x8xf32>
    %104 = arith.mulf %101, %103 : vector<8x8xf32>
    %c8_32 = arith.constant 8 : index
    %c0_33 = arith.constant 0 : index
    %105 = vector.load %arg8[%c8_32, %c0_33] : memref<16x32xf32, #tpu.memory_space<vmem>>, vector<8x8xf32>
    tpu.vector_store %arg8[%c8_32, %c0_33], %104 {strides = array<i32>} : memref<16x32xf32, #tpu.memory_space<vmem>>, vector<8x8xf32>,
    %106 = vector.extract_strided_slice %7 {offsets = [8, 8], sizes = [8, 8], strides = [1, 1]} : vector<16x96xbf16> to vector<8x8xbf16>
    %107 = vector.extract_strided_slice %7 {offsets = [8, 40], sizes = [8, 8], strides = [1, 1]} : vector<16x96xbf16> to vector<8x8xbf16>
    %108 = vector.extract_strided_slice %7 {offsets = [8, 72], sizes = [8, 8], strides = [1, 1]} : vector<16x96xbf16> to vector<8x8xbf16>
    %cst_34 = arith.constant dense<0.000000e+00> : vector<8x8xf32>
    %109 = tpu.matmul %106, %107, %cst_34 {dimension_numbers = #tpu.dot_dimension_numbers<[1], [1], [0], [0], [0, 0, 1, 0], [], []>} : vector<8x8xbf16>, vector<8x8xbf16>, vector<8x8xf32> -> vector<8x8xf32>
    %110 = vector.broadcast %86 : vector<1x8xf32> to vector<8x8xf32>
    %111 = arith.addf %109, %110 : vector<8x8xf32>
    %cst_35 = arith.constant dense<0xFF800000> : vector<8xf32>
    %112 = vector.multi_reduction <maximumf>, %111, %cst_35 [1] : vector<8x8xf32> to vector<8xf32>
    %113 = vector.shape_cast %112 : vector<8xf32> to vector<8x1xf32>
    %114 = vector.broadcast %113 : vector<8x1xf32> to vector<8x8xf32>
    %115 = arith.subf %111, %114 : vector<8x8xf32>
    %116 = math.exp %115 : vector<8x8xf32>
    %cst_36 = arith.constant dense<0.000000e+00> : vector<8xf32>
    %117 = vector.multi_reduction <add>, %116, %cst_36 [1] : vector<8x8xf32> to vector<8xf32>
    %118 = vector.shape_cast %117 : vector<8xf32> to vector<8x1xf32>
    %119 = arith.truncf %116 : vector<8x8xf32> to vector<8x8xbf16>
    %cst_37 = arith.constant dense<0.000000e+00> : vector<8x8xf32>
    %120 = tpu.matmul %119, %108, %cst_37 {dimension_numbers = #tpu.dot_dimension_numbers<[1], [0], [0], [1], [0, 0, 1, 1], [], []>} : vector<8x8xbf16>, vector<8x8xbf16>, vector<8x8xf32> -> vector<8x8xf32>
    %121 = tpu.reciprocal %118 {approx = true} : vector<8x1xf32> -> vector<8x1xf32>
    %122 = vector.broadcast %121 : vector<8x1xf32> to vector<8x8xf32>
    %123 = arith.mulf %120, %122 : vector<8x8xf32>
    %c8_38 = arith.constant 8 : index
    %c8_39 = arith.constant 8 : index
    %124 = vector.load %arg8[%c8_38, %c8_39] : memref<16x32xf32, #tpu.memory_space<vmem>>, vector<8x8xf32>
    tpu.vector_store %arg8[%c8_38, %c8_39], %123 {strides = array<i32>} : memref<16x32xf32, #tpu.memory_space<vmem>>, vector<8x8xf32>,
    %125 = vector.extract_strided_slice %7 {offsets = [8, 16], sizes = [8, 8], strides = [1, 1]} : vector<16x96xbf16> to vector<8x8xbf16>
    %126 = vector.extract_strided_slice %7 {offsets = [8, 48], sizes = [8, 8], strides = [1, 1]} : vector<16x96xbf16> to vector<8x8xbf16>
    %127 = vector.extract_strided_slice %7 {offsets = [8, 80], sizes = [8, 8], strides = [1, 1]} : vector<16x96xbf16> to vector<8x8xbf16>
    %cst_40 = arith.constant dense<0.000000e+00> : vector<8x8xf32>
    %128 = tpu.matmul %125, %126, %cst_40 {dimension_numbers = #tpu.dot_dimension_numbers<[1], [1], [0], [0], [0, 0, 1, 0], [], []>} : vector<8x8xbf16>, vector<8x8xbf16>, vector<8x8xf32> -> vector<8x8xf32>
    %129 = vector.broadcast %86 : vector<1x8xf32> to vector<8x8xf32>
    %130 = arith.addf %128, %129 : vector<8x8xf32>
    %cst_41 = arith.constant dense<0xFF800000> : vector<8xf32>
    %131 = vector.multi_reduction <maximumf>, %130, %cst_41 [1] : vector<8x8xf32> to vector<8xf32>
    %132 = vector.shape_cast %131 : vector<8xf32> to vector<8x1xf32>
    %133 = vector.broadcast %132 : vector<8x1xf32> to vector<8x8xf32>
    %134 = arith.subf %130, %133 : vector<8x8xf32>
    %135 = math.exp %134 : vector<8x8xf32>
    %cst_42 = arith.constant dense<0.000000e+00> : vector<8xf32>
    %136 = vector.multi_reduction <add>, %135, %cst_42 [1] : vector<8x8xf32> to vector<8xf32>
    %137 = vector.shape_cast %136 : vector<8xf32> to vector<8x1xf32>
    %138 = arith.truncf %135 : vector<8x8xf32> to vector<8x8xbf16>
    %cst_43 = arith.constant dense<0.000000e+00> : vector<8x8xf32>
    %139 = tpu.matmul %138, %127, %cst_43 {dimension_numbers = #tpu.dot_dimension_numbers<[1], [0], [0], [1], [0, 0, 1, 1], [], []>} : vector<8x8xbf16>, vector<8x8xbf16>, vector<8x8xf32> -> vector<8x8xf32>
    %140 = tpu.reciprocal %137 {approx = true} : vector<8x1xf32> -> vector<8x1xf32>
    %141 = vector.broadcast %140 : vector<8x1xf32> to vector<8x8xf32>
    %142 = arith.mulf %139, %141 : vector<8x8xf32>
    %c8_44 = arith.constant 8 : index
    %c16_45 = arith.constant 16 : index
    %143 = vector.load %arg8[%c8_44, %c16_45] : memref<16x32xf32, #tpu.memory_space<vmem>>, vector<8x8xf32>
    tpu.vector_store %arg8[%c8_44, %c16_45], %142 {strides = array<i32>} : memref<16x32xf32, #tpu.memory_space<vmem>>, vector<8x8xf32>,
    %144 = vector.extract_strided_slice %7 {offsets = [8, 24], sizes = [8, 8], strides = [1, 1]} : vector<16x96xbf16> to vector<8x8xbf16>
    %145 = vector.extract_strided_slice %7 {offsets = [8, 56], sizes = [8, 8], strides = [1, 1]} : vector<16x96xbf16> to vector<8x8xbf16>
    %146 = vector.extract_strided_slice %7 {offsets = [8, 88], sizes = [8, 8], strides = [1, 1]} : vector<16x96xbf16> to vector<8x8xbf16>
    %cst_46 = arith.constant dense<0.000000e+00> : vector<8x8xf32>
    %147 = tpu.matmul %144, %145, %cst_46 {dimension_numbers = #tpu.dot_dimension_numbers<[1], [1], [0], [0], [0, 0, 1, 0], [], []>} : vector<8x8xbf16>, vector<8x8xbf16>, vector<8x8xf32> -> vector<8x8xf32>
    %148 = vector.broadcast %86 : vector<1x8xf32> to vector<8x8xf32>
    %149 = arith.addf %147, %148 : vector<8x8xf32>
    %cst_47 = arith.constant dense<0xFF800000> : vector<8xf32>
    %150 = vector.multi_reduction <maximumf>, %149, %cst_47 [1] : vector<8x8xf32> to vector<8xf32>
    %151 = vector.shape_cast %150 : vector<8xf32> to vector<8x1xf32>
    %152 = vector.broadcast %151 : vector<8x1xf32> to vector<8x8xf32>
    %153 = arith.subf %149, %152 : vector<8x8xf32>
    %154 = math.exp %153 : vector<8x8xf32>
    %cst_48 = arith.constant dense<0.000000e+00> : vector<8xf32>
    %155 = vector.multi_reduction <add>, %154, %cst_48 [1] : vector<8x8xf32> to vector<8xf32>
    %156 = vector.shape_cast %155 : vector<8xf32> to vector<8x1xf32>
    %157 = arith.truncf %154 : vector<8x8xf32> to vector<8x8xbf16>
    %cst_49 = arith.constant dense<0.000000e+00> : vector<8x8xf32>
    %158 = tpu.matmul %157, %146, %cst_49 {dimension_numbers = #tpu.dot_dimension_numbers<[1], [0], [0], [1], [0, 0, 1, 1], [], []>} : vector<8x8xbf16>, vector<8x8xbf16>, vector<8x8xf32> -> vector<8x8xf32>
    %159 = tpu.reciprocal %156 {approx = true} : vector<8x1xf32> -> vector<8x1xf32>
    %160 = vector.broadcast %159 : vector<8x1xf32> to vector<8x8xf32>
    %161 = arith.mulf %158, %160 : vector<8x8xf32>
    %c8_50 = arith.constant 8 : index
    %c24_51 = arith.constant 24 : index
    %162 = vector.load %arg8[%c8_50, %c24_51] : memref<16x32xf32, #tpu.memory_space<vmem>>, vector<8x8xf32>
    tpu.vector_store %arg8[%c8_50, %c24_51], %161 {strides = array<i32>} : memref<16x32xf32, #tpu.memory_space<vmem>>, vector<8x8xf32>,
    %c0_52 = arith.constant 0 : index
    %c0_53 = arith.constant 0 : index
    %163 = vector.load %arg8[%c0_52, %c0_53] : memref<16x32xf32, #tpu.memory_space<vmem>>, vector<16x32xf32>
    %164 = arith.truncf %163 : vector<16x32xf32> to vector<16x32xbf16>
    %c0_54 = arith.constant 0 : index
    %c0_55 = arith.constant 0 : index
    %165 = vector.load %arg5[%c0_54, %c0_55] : memref<32x32xbf16, #tpu.memory_space<vmem>>, vector<32x32xbf16>
    %cst_56 = arith.constant dense<0.000000e+00> : vector<16x32xf32>
    %166 = tpu.matmul %164, %165, %cst_56 {dimension_numbers = #tpu.dot_dimension_numbers<[1], [0], [0], [1], [0, 0, 1, 1], [], []>} : vector<16x32xbf16>, vector<32x32xbf16>, vector<16x32xf32> -> vector<16x32xf32>
    %c0_57 = arith.constant 0 : index
    %c0_58 = arith.constant 0 : index
    %167 = vector.load %arg6[%c0_57, %c0_58] : memref<3x32xf32, #tpu.memory_space<vmem>>, vector<1x32xf32>
    %168 = vector.broadcast %167 : vector<1x32xf32> to vector<16x32xf32>
    %169 = arith.addf %166, %168 : vector<16x32xf32>
    %170 = arith.addf %169, %0 : vector<16x32xf32>
    %cst_59 = arith.constant dense<0.000000e+00> : vector<16xf32>
    %171 = vector.multi_reduction <add>, %170, %cst_59 [1] : vector<16x32xf32> to vector<16xf32>
    %172 = vector.shape_cast %171 : vector<16xf32> to vector<16x1xf32>
    %cst_60 = arith.constant 3.200000e+01 : f32
    %173 = vector.broadcast %cst_60 : f32 to vector<16x1xf32>
    %174 = arith.divf %172, %173 : vector<16x1xf32>
    %175 = vector.broadcast %174 : vector<16x1xf32> to vector<16x32xf32>
    %176 = arith.subf %170, %175 : vector<16x32xf32>
    %177 = arith.mulf %176, %176 : vector<16x32xf32>
    %cst_61 = arith.constant dense<0.000000e+00> : vector<16xf32>
    %178 = vector.multi_reduction <add>, %177, %cst_61 [1] : vector<16x32xf32> to vector<16xf32>
    %179 = vector.shape_cast %178 : vector<16xf32> to vector<16x1xf32>
    %cst_62 = arith.constant 3.200000e+01 : f32
    %180 = vector.broadcast %cst_62 : f32 to vector<16x1xf32>
    %181 = arith.divf %179, %180 : vector<16x1xf32>
    %cst_63 = arith.constant 9.99999996E-13 : f32
    %182 = vector.broadcast %cst_63 : f32 to vector<16x1xf32>
    %183 = arith.addf %181, %182 : vector<16x1xf32>
    %184 = math.rsqrt %183 : vector<16x1xf32>
    %185 = vector.broadcast %184 : vector<16x1xf32> to vector<16x32xf32>
    %186 = arith.mulf %176, %185 : vector<16x32xf32>
    %c1 = arith.constant 1 : index
    %c0_64 = arith.constant 0 : index
    %187 = vector.load %arg6[%c1, %c0_64] : memref<3x32xf32, #tpu.memory_space<vmem>>, vector<1x32xf32>
    %188 = vector.broadcast %187 : vector<1x32xf32> to vector<16x32xf32>
    %189 = arith.mulf %186, %188 : vector<16x32xf32>
    %c2 = arith.constant 2 : index
    %c0_65 = arith.constant 0 : index
    %190 = vector.load %arg6[%c2, %c0_65] : memref<3x32xf32, #tpu.memory_space<vmem>>, vector<1x32xf32>
    %191 = vector.broadcast %190 : vector<1x32xf32> to vector<16x32xf32>
    %192 = arith.addf %189, %191 : vector<16x32xf32>
    %c0_66 = arith.constant 0 : index
    %c0_67 = arith.constant 0 : index
    %193 = vector.load %arg7[%c0_66, %c0_67] : memref<16x32xf32, #tpu.memory_space<vmem>>, vector<16x32xf32>
    tpu.vector_store %arg7[%c0_66, %c0_67], %192 {strides = array<i32>} : memref<16x32xf32, #tpu.memory_space<vmem>>, vector<16x32xf32>,
    return
  }
  func.func @transform_0(%arg0: i32) -> (i32, i32) {
    %c0_i32 = arith.constant 0 : i32
    %c0_i32_0 = arith.constant 0 : i32
    %c0_i32_1 = arith.constant 0 : i32
    return %c0_i32, %c0_i32_0 : i32, i32
  }
  func.func @transform_1(%arg0: i32) -> (i32, i32) {
    %c0_i32 = arith.constant 0 : i32
    %c0_i32_0 = arith.constant 0 : i32
    %c0_i32_1 = arith.constant 0 : i32
    return %c0_i32, %c0_i32_0 : i32, i32
  }
  func.func @transform_2(%arg0: i32) -> (i32, i32) {
    %c0_i32 = arith.constant 0 : i32
    %c0_i32_0 = arith.constant 0 : i32
    %c0_i32_1 = arith.constant 0 : i32
    return %c0_i32, %c0_i32_0 : i32, i32
  }
  func.func @transform_3(%arg0: i32) -> (i32, i32) {
    %c0_i32 = arith.constant 0 : i32
    %c0_i32_0 = arith.constant 0 : i32
    %c0_i32_1 = arith.constant 0 : i32
    return %c0_i32, %c0_i32_0 : i32, i32
  }
  func.func @transform_4(%arg0: i32) -> (i32, i32) {
    %c0_i32 = arith.constant 0 : i32
    %c0_i32_0 = arith.constant 0 : i32
    %c0_i32_1 = arith.constant 0 : i32
    return %c0_i32, %c0_i32_0 : i32, i32
  }
  func.func @transform_5(%arg0: i32) -> (i32, i32) {
    %c0_i32 = arith.constant 0 : i32
    %c0_i32_0 = arith.constant 0 : i32
    %c0_i32_1 = arith.constant 0 : i32
    return %c0_i32, %c0_i32_0 : i32, i32
  }
  func.func @transform_6(%arg0: i32) -> (i32, i32) {
    %c0_i32 = arith.constant 0 : i32
    %c0_i32_0 = arith.constant 0 : i32
    %c0_i32_1 = arith.constant 0 : i32
    return %c0_i32, %c0_i32_0 : i32, i32
  }
}

</mosaic_0001>

<llo_original>
// kernel: tpu_custom_call.1
$region0: #{tpu_custom_call.1}
  #allocation0 [shape = 'u32[]', space=smem, size = 0x4, offset = 0x4, fixed_abs, tag = 'smem constant byte address 0x4 - core index']
  #allocation1 [shape = 'u32[144,128]{1,0:T(1,128)}', space=vmem, size = 0x12000, scoped, tag = 'internal scratch']
  #allocation2 [shape = 'f32[16,32]{1,0:T(8,128)}', space=vmem, size = 0x2000, scoped, tag = 'scratch operand']
  %s0 = inlined_call_operand.hbm [shape: f32[16,32], index: 0, kind: input, shape index: {}]
  %s1 = inlined_call_operand.vmem [shape: f32[2,8], index: 1, kind: input, shape index: {}]
  %s2 = inlined_call_operand.hbm [shape: bf16[32,96], index: 2, kind: input, shape index: {}]
  %s3 = inlined_call_operand.vmem [shape: f32[1,96], index: 3, kind: input, shape index: {}]
  %s4 = inlined_call_operand.hbm [shape: bf16[32,32], index: 4, kind: input, shape index: {}]
  %s5 = inlined_call_operand.vmem [shape: f32[3,32], index: 5, kind: input, shape index: {}]
  %s6 = inlined_call_operand.hbm [shape: f32[16,32], index: 6, kind: output, shape index: {}]
  %s7 = sld [smem:[#allocation0]]
  $region46: #{tpu_custom_call.1} parent=0
    _
  %s9 = ssub.s32 1, %s7
  %s10 = scalar_select 0, %s9, %s7
  $region1: #{tpu_custom_call.1} parent=0
    #allocation3 [shape = 'u8[8192]{0}', space=vmem, size = 0x2000, scoped, tag = 'input window, operand 0, single buffered']
    #allocation4 [shape = 's32[1]{0}', space=sflag, size = 0x4, scoped, tag = 'scoped memory for tpu_custom_call.1']
    #allocation5 [shape = 's32[1]{0}', space=sflag, size = 0x4, scoped, tag = 'scoped memory for tpu_custom_call.1']
    #allocation6 [shape = 'u8[8192]{0}', space=vmem, size = 0x2000, scoped, tag = 'input window, operand 2, single buffered']
    #allocation7 [shape = 's32[1]{0}', space=sflag, size = 0x4, scoped, tag = 'scoped memory for tpu_custom_call.1']
    #allocation8 [shape = 'u8[8192]{0}', space=vmem, size = 0x2000, scoped, tag = 'input window, operand 4, single buffered']
    #allocation9 [shape = 'u8[8192]{0}', space=vmem, size = 0x2000, scoped, tag = 'output window, operand 0, single buffered']
    %11 = vsyncpa [#allocation4], 0
    %12 = vsyncpa [#allocation7], 0
    %13 = vsyncpa [#allocation5], 0
    // Predicated region
    $region2: #{tpu_custom_call.1} parent=1 // pred_check
      _
    $region3: #{tpu_custom_call.1} parent=1 // pred_check_branch
      %15 = sbr.rel (0) target = $region5
    $region4: #{tpu_custom_call.1} parent=1 // pred_region
      %s17 = ssub.s32 256, 256
      %18 = vsyncadd [#allocation4], %s17
      %s19 = sshll.u32 [#allocation3], 4
      %s20 = int_to_ptr.vmem [resolvable:$true] %s19
      %25 = dma.hbm_to_vmem [thread:$0]  %s0, 256, %s20, [#allocation4], 128, 128, 8
    $region5: #{tpu_custom_call.1} parent=1 // pred_fallthru
      _
    // Predicated region
    $region6: #{tpu_custom_call.1} parent=1 // pred_check
      _
    $region7: #{tpu_custom_call.1} parent=1 // pred_check_branch
      %27 = sbr.rel (0) target = $region9
    $region8: #{tpu_custom_call.1} parent=1 // pred_region
      _
    $region9: #{tpu_custom_call.1} parent=1 // pred_fallthru
      _
    // Predicated region
    $region10: #{tpu_custom_call.1} parent=1 // pred_check
      _
    $region11: #{tpu_custom_call.1} parent=1 // pred_check_branch
      %29 = sbr.rel (0) target = $region13
    $region12: #{tpu_custom_call.1} parent=1 // pred_region
      %s31 = ssub.s32 256, 256
      %32 = vsyncadd [#allocation7], %s31
      %s33 = sshll.u32 [#allocation6], 4
      %s34 = int_to_ptr.vmem [resolvable:$true] %s33
      %39 = dma.hbm_to_vmem [thread:$0]  %s2, 256, %s34, [#allocation7], 64, 64, 4
    $region13: #{tpu_custom_call.1} parent=1 // pred_fallthru
      _
    // Predicated region
    $region14: #{tpu_custom_call.1} parent=1 // pred_check
      _
    $region15: #{tpu_custom_call.1} parent=1 // pred_check_branch
      %41 = sbr.rel (0) target = $region17
    $region16: #{tpu_custom_call.1} parent=1 // pred_region
      _
    $region17: #{tpu_custom_call.1} parent=1 // pred_fallthru
      _
    // Predicated region
    $region18: #{tpu_custom_call.1} parent=1 // pred_check
      _
    $region19: #{tpu_custom_call.1} parent=1 // pred_check_branch
      %43 = sbr.rel (0) target = $region21
    $region20: #{tpu_custom_call.1} parent=1 // pred_region
      %s45 = ssub.s32 256, 256
      %46 = vsyncadd [#allocation7], %s45
      %s47 = sshll.u32 [#allocation8], 4
      %s48 = int_to_ptr.vmem [resolvable:$true] %s47
      %53 = dma.hbm_to_vmem [thread:$0]  %s4, 256, %s48, [#allocation7], 64, 64, 4
    $region21: #{tpu_custom_call.1} parent=1 // pred_fallthru
      _
    // Predicated region
    $region22: #{tpu_custom_call.1} parent=1 // pred_check
      _
    $region23: #{tpu_custom_call.1} parent=1 // pred_check_branch
      %55 = sbr.rel (0) target = $region25
    $region24: #{tpu_custom_call.1} parent=1 // pred_region
      _
    $region25: #{tpu_custom_call.1} parent=1 // pred_fallthru
      _
    // Predicated region
    $region26: #{tpu_custom_call.1} parent=1 // pred_check
      _
    $region27: #{tpu_custom_call.1} parent=1 // pred_check_branch
      %57 = sbr.rel (0) target = $region29
    $region28: #{tpu_custom_call.1} parent=1 // pred_region
      %58 = dma.done [#allocation4], 256
    $region29: #{tpu_custom_call.1} parent=1 // pred_fallthru
      _
    // Predicated region
    $region30: #{tpu_custom_call.1} parent=1 // pred_check
      _
    $region31: #{tpu_custom_call.1} parent=1 // pred_check_branch
      %60 = sbr.rel (0) target = $region33
    $region32: #{tpu_custom_call.1} parent=1 // pred_region
      %61 = dma.done [#allocation7], 256
    $region33: #{tpu_custom_call.1} parent=1 // pred_fallthru
      _
    // Predicated region
    $region34: #{tpu_custom_call.1} parent=1 // pred_check
      _
    $region35: #{tpu_custom_call.1} parent=1 // pred_check_branch
      %63 = sbr.rel (0) target = $region37
    $region36: #{tpu_custom_call.1} parent=1 // pred_region
      %64 = dma.done [#allocation7], 256
    $region37: #{tpu_custom_call.1} parent=1 // pred_fallthru
      _
    %v66 = vld [vmem:[#allocation3] sm:$0xff]
    %v67 = vld [vmem:[#allocation3 + $0x8] sm:$0xff]
    %v68 = vpack.c.bf16 %v67, %v66
    %v69 = vld [vmem:[#allocation6] sm:$0xf]
    %v70 = vld [vmem:[#allocation6 + $0x4] sm:$0xf]
    %v71 = vld [vmem:[#allocation6 + $0x8] sm:$0xf]
    %v72 = vld [vmem:[#allocation6 + $0xc] sm:$0xf]
    %v73 = vld [vmem:[%s3] sm:$0x1]
    %v75 = vlaneseq
    %v76 = vshrl.u32 %v75, 7
    %v77 = vsub.s32 0, %v76
    %v78 = vrot.slane %v73, %v77
    %v84 = vunpack.c.l.b16 %v69
    %v85 = vunpack.c.l.b16 %v70
    %v86 = vunpack.c.l.b16 %v71
    %v87 = vunpack.c.l.b16 %v72
    %v88 = vpack.c.b16 %v85, %v84
    %v89 = vpack.c.b16 %v87, %v86
    %vm92 = vcmask 261120
    %v94 = vsel %vm92, %v68, 0
    %96 = vmatprep.subr.bf16.mxu0 0
    %97 = vmatpush1.bf16.msra.mxu0 %v88
    %98 = vmatprep.subr.bf16.mxu0 0
    %99 = vmatpush1.bf16.msra.mxu0 %v89
    %100 = vmatprep.subr.bf16.mxu0 0
    %101 = vmatpush1.bf16.msra.mxu0 0
    %102 = vmatprep.subr.bf16.mxu0 0
    %103 = vmatpush1.bf16.msra.mxu0 0
    %104 = vmatprep.subr.bf16.mxu0 0
    %105 = vmatpush1.bf16.msra.mxu0 0
    %106 = vmatprep.subr.bf16.mxu0 0
    %107 = vmatpush1.bf16.msra.mxu0 0
    %108 = vmatprep.subr.bf16.mxu0 0
    %109 = vmatpush1.bf16.msra.mxu0 0
    %110 = vmatprep.subr.bf16.mxu0 0
    %111 = vmatpush1.bf16.msra.mxu0 0
    %112 = vmatprep.subr.bf16.mxu0 0
    %113 = vmatpush1.bf16.msra.mxu0 0
    %114 = vmatprep.subr.bf16.mxu0 0
    %115 = vmatpush1.bf16.msra.mxu0 0
    %116 = vmatprep.subr.bf16.mxu0 0
    %117 = vmatpush1.bf16.msra.mxu0 0
    %118 = vmatprep.subr.bf16.mxu0 0
    %119 = vmatpush1.bf16.msra.mxu0 0
    %120 = vmatprep.subr.bf16.mxu0 0
    %121 = vmatpush1.bf16.msra.mxu0 0
    %122 = vmatprep.subr.bf16.mxu0 0
    %123 = vmatpush1.bf16.msra.mxu0 0
    %124 = vmatprep.subr.bf16.mxu0 0
    %125 = vmatpush1.bf16.msra.mxu0 0
    %126 = vmatprep.subr.bf16.mxu0 0
    %127 = vmatpush1.bf16.msra.mxu0 0
    %128 = vmatprep.mubr.bf16.mxu0 0
    %129 = vmatmul.mubr.bf16.gmra.mrb[0].mxu0 %v94
    %v130 = vpop.f32.mrb[0].mxu0
    %v131 = vadd.f32 %v78, %v130
    %v132 = vpop.f32.mrb[0].mxu0
    %v133 = vpop.f32.mrb[0].mxu0
    %v134 = vadd.f32 %v78, %v133
    %v135 = vpop.f32.mrb[0].mxu0
    %136 = vdwg.mxu0
    %v137 = vpack.c.bf16 %v134, %v131
    %v138 = vld [vmem:[%s1] sm:$0x3]
    %v139 = vlaneseq
    %v140 = vshrl.u32 %v139, 7
    %v141 = vsub.s32 0, %v140
    %v142 = vrot.slane %v138, %v141
    %144 = vrot.lane.b32.xlu0 %v137, 96
    %v145 = vpop.permute.xlu0 %144
    %vm146 = vcmask 64512
    %v148 = vsel %vm146, %v137, 0
    %v151 = vsel %vm146, %v145, 0
    %153 = vmatprep.subr.bf16.mxu0 0
    %154 = vmatpush1.bf16.xpose.msra.mxu0 %v151
    %155 = vmatprep.subr.bf16.mxu0 0
    %156 = vmatpush1.bf16.xpose.msra.mxu0 0
    %157 = vmatprep.subr.bf16.mxu0 0
    %158 = vmatpush1.bf16.xpose.msra.mxu0 0
    %159 = vmatprep.subr.bf16.mxu0 0
    %160 = vmatpush1.bf16.xpose.msra.mxu0 0
    %161 = vmatprep.subr.bf16.mxu0 0
    %162 = vmatpush1.bf16.xpose.msra.mxu0 0
    %163 = vmatprep.subr.bf16.mxu0 0
    %164 = vmatpush1.bf16.xpose.msra.mxu0 0
    %165 = vmatprep.subr.bf16.mxu0 0
    %166 = vmatpush1.bf16.xpose.msra.mxu0 0
    %167 = vmatprep.subr.bf16.mxu0 0
    %168 = vmatpush1.bf16.xpose.msra.mxu0 0
    %169 = vmatprep.subr.bf16.mxu0 0
    %170 = vmatpush1.bf16.xpose.msra.mxu0 0
    %171 = vmatprep.subr.bf16.mxu0 0
    %172 = vmatpush1.bf16.xpose.msra.mxu0 0
    %173 = vmatprep.subr.bf16.mxu0 0
    %174 = vmatpush1.bf16.xpose.msra.mxu0 0
    %175 = vmatprep.subr.bf16.mxu0 0
    %176 = vmatpush1.bf16.xpose.msra.mxu0 0
    %177 = vmatprep.subr.bf16.mxu0 0
    %178 = vmatpush1.bf16.xpose.msra.mxu0 0
    %179 = vmatprep.subr.bf16.mxu0 0
    %180 = vmatpush1.bf16.xpose.msra.mxu0 0
    %181 = vmatprep.subr.bf16.mxu0 0
    %182 = vmatpush1.bf16.xpose.msra.mxu0 0
    %183 = vmatprep.subr.bf16.mxu0 0
    %184 = vmatpush1.bf16.xpose.msra.mxu0 0
    %185 = vmatprep.mubr.bf16.mxu0 0
    %186 = vmatmul.mubr.bf16.gmra.mrb[0].mxu0 %v148
    %v187 = vpop.f32.mrb[0].mxu0
    %v188 = vadd.f32 %v142, %v187
    %v189 = vpop.f32.mrb[0].mxu0
    %v190 = vpop.f32.mrb[0].mxu0
    %v191 = vpop.f32.mrb[0].mxu0
    %192 = vdwg.mxu0
    %v193 = vsel %vm146, %v188, -inf
    %194 = vmax.xlane.f32.xlu0 %v193
    %v195 = vpop.xlane.xlu0 %194
    %v196 = vsub.f32 %v188, %v195
    %v197 = vmul.f32 %v196, 1.442695
    %v198 = vpow.pop %v197
    %v199 = vsel %vm146, %v198, 0.0
    %200 = vadd.xlane.f32.xlu0 %v199
    %v201 = vpop.xlane.xlu0 %200
    %v202 = vpack.c.bf16 %v198, %v198
    %203 = vrot.lane.b32.xlu0 %v137, 64
    %v204 = vpop.permute.xlu0 %203
    %v206 = vsel %vm146, %v202, 0
    %vm208 = vcmask 1043456
    %v210 = vsel %vm208, %v204, 0
    %212 = vmatprep.subr.bf16.mxu0 0
    %213 = vmatpush1.bf16.msra.mxu0 %v210
    %214 = vmatprep.subr.bf16.mxu0 0
    %215 = vmatpush1.bf16.msra.mxu0 0
    %216 = vmatprep.subr.bf16.mxu0 0
    %217 = vmatpush1.bf16.msra.mxu0 0
    %218 = vmatprep.subr.bf16.mxu0 0
    %219 = vmatpush1.bf16.msra.mxu0 0
    %220 = vmatprep.subr.bf16.mxu0 0
    %221 = vmatpush1.bf16.msra.mxu0 0
    %222 = vmatprep.subr.bf16.mxu0 0
    %223 = vmatpush1.bf16.msra.mxu0 0
    %224 = vmatprep.subr.bf16.mxu0 0
    %225 = vmatpush1.bf16.msra.mxu0 0
    %226 = vmatprep.subr.bf16.mxu0 0
    %227 = vmatpush1.bf16.msra.mxu0 0
    %228 = vmatprep.subr.bf16.mxu0 0
    %229 = vmatpush1.bf16.msra.mxu0 0
    %230 = vmatprep.subr.bf16.mxu0 0
    %231 = vmatpush1.bf16.msra.mxu0 0
    %232 = vmatprep.subr.bf16.mxu0 0
    %233 = vmatpush1.bf16.msra.mxu0 0
    %234 = vmatprep.subr.bf16.mxu0 0
    %235 = vmatpush1.bf16.msra.mxu0 0
    %236 = vmatprep.subr.bf16.mxu0 0
    %237 = vmatpush1.bf16.msra.mxu0 0
    %238 = vmatprep.subr.bf16.mxu0 0
    %239 = vmatpush1.bf16.msra.mxu0 0
    %240 = vmatprep.subr.bf16.mxu0 0
    %241 = vmatpush1.bf16.msra.mxu0 0
    %242 = vmatprep.subr.bf16.mxu0 0
    %243 = vmatpush1.bf16.msra.mxu0 0
    %244 = vmatprep.mubr.bf16.mxu0 0
    %245 = vmatmul.mubr.bf16.gmra.mrb[0].mxu0 %v206
    %v246 = vpop.f32.mrb[0].mxu0
    %v247 = vadd.f32 0.0, %v246
    %v248 = vpop.f32.mrb[0].mxu0
    %v249 = vpop.f32.mrb[0].mxu0
    %v250 = vpop.f32.mrb[0].mxu0
    %251 = vdwg.mxu0
    %v252 = vrcp.pop %v201
    %v253 = vmul.f32 %v247, %v252
    %254 = vst.msk [vmem:[#allocation2] sm:$0xff] %vm146, %v253
    %255 = vrot.lane.b32.xlu0 %v137, 120
    %v256 = vpop.permute.xlu0 %255
    %257 = vrot.lane.b32.xlu0 %v137, 88
    %v258 = vpop.permute.xlu0 %257
    %v260 = vsel %vm146, %v256, 0
    %v263 = vsel %vm146, %v258, 0
    %265 = vmatprep.subr.bf16.mxu0 0
    %266 = vmatpush1.bf16.xpose.msra.mxu0 %v263
    %267 = vmatprep.subr.bf16.mxu0 0
    %268 = vmatpush1.bf16.xpose.msra.mxu0 0
    %269 = vmatprep.subr.bf16.mxu0 0
    %270 = vmatpush1.bf16.xpose.msra.mxu0 0
    %271 = vmatprep.subr.bf16.mxu0 0
    %272 = vmatpush1.bf16.xpose.msra.mxu0 0
    %273 = vmatprep.subr.bf16.mxu0 0
    %274 = vmatpush1.bf16.xpose.msra.mxu0 0
    %275 = vmatprep.subr.bf16.mxu0 0
    %276 = vmatpush1.bf16.xpose.msra.mxu0 0
    %277 = vmatprep.subr.bf16.mxu0 0
    %278 = vmatpush1.bf16.xpose.msra.mxu0 0
    %279 = vmatprep.subr.bf16.mxu0 0
    %280 = vmatpush1.bf16.xpose.msra.mxu0 0
    %281 = vmatprep.subr.bf16.mxu0 0
    %282 = vmatpush1.bf16.xpose.msra.mxu0 0
    %283 = vmatprep.subr.bf16.mxu0 0
    %284 = vmatpush1.bf16.xpose.msra.mxu0 0
    %285 = vmatprep.subr.bf16.mxu0 0
    %286 = vmatpush1.bf16.xpose.msra.mxu0 0
    %287 = vmatprep.subr.bf16.mxu0 0
    %288 = vmatpush1.bf16.xpose.msra.mxu0 0
    %289 = vmatprep.subr.bf16.mxu0 0
    %290 = vmatpush1.bf16.xpose.msra.mxu0 0
    %291 = vmatprep.subr.bf16.mxu0 0
    %292 = vmatpush1.bf16.xpose.msra.mxu0 0
    %293 = vmatprep.subr.bf16.mxu0 0
    %294 = vmatpush1.bf16.xpose.msra.mxu0 0
    %295 = vmatprep.subr.bf16.mxu0 0
    %296 = vmatpush1.bf16.xpose.msra.mxu0 0
    %297 = vmatprep.mubr.bf16.mxu0 0
    %298 = vmatmul.mubr.bf16.gmra.mrb[0].mxu0 %v260
    %v299 = vpop.f32.mrb[0].mxu0
    %v300 = vadd.f32 %v142, %v299
    %v301 = vpop.f32.mrb[0].mxu0
    %v302 = vpop.f32.mrb[0].mxu0
    %v303 = vpop.f32.mrb[0].mxu0
    %304 = vdwg.mxu0
    %v305 = vsel %vm146, %v300, -inf
    %306 = vmax.xlane.f32.xlu0 %v305
    %v307 = vpop.xlane.xlu0 %306
    %v308 = vsub.f32 %v300, %v307
    %v309 = vmul.f32 %v308, 1.442695
    %v310 = vpow.pop %v309
    %v311 = vsel %vm146, %v310, 0.0
    %312 = vadd.xlane.f32.xlu0 %v311
    %v313 = vpop.xlane.xlu0 %312
    %v314 = vpack.c.bf16 %v310, %v310
    %315 = vrot.lane.b32.xlu0 %v137, 56
    %v316 = vpop.permute.xlu0 %315
    %v318 = vsel %vm146, %v314, 0
    %v321 = vsel %vm208, %v316, 0
    %323 = vmatprep.subr.bf16.mxu0 0
    %324 = vmatpush1.bf16.msra.mxu0 %v321
    %325 = vmatprep.subr.bf16.mxu0 0
    %326 = vmatpush1.bf16.msra.mxu0 0
    %327 = vmatprep.subr.bf16.mxu0 0
    %328 = vmatpush1.bf16.msra.mxu0 0
    %329 = vmatprep.subr.bf16.mxu0 0
    %330 = vmatpush1.bf16.msra.mxu0 0
    %331 = vmatprep.subr.bf16.mxu0 0
    %332 = vmatpush1.bf16.msra.mxu0 0
    %333 = vmatprep.subr.bf16.mxu0 0
    %334 = vmatpush1.bf16.msra.mxu0 0
    %335 = vmatprep.subr.bf16.mxu0 0
    %336 = vmatpush1.bf16.msra.mxu0 0
    %337 = vmatprep.subr.bf16.mxu0 0
    %338 = vmatpush1.bf16.msra.mxu0 0
    %339 = vmatprep.subr.bf16.mxu0 0
    %340 = vmatpush1.bf16.msra.mxu0 0
    %341 = vmatprep.subr.bf16.mxu0 0
    %342 = vmatpush1.bf16.msra.mxu0 0
    %343 = vmatprep.subr.bf16.mxu0 0
    %344 = vmatpush1.bf16.msra.mxu0 0
    %345 = vmatprep.subr.bf16.mxu0 0
    %346 = vmatpush1.bf16.msra.mxu0 0
    %347 = vmatprep.subr.bf16.mxu0 0
    %348 = vmatpush1.bf16.msra.mxu0 0
    %349 = vmatprep.subr.bf16.mxu0 0
    %350 = vmatpush1.bf16.msra.mxu0 0
    %351 = vmatprep.subr.bf16.mxu0 0
    %352 = vmatpush1.bf16.msra.mxu0 0
    %353 = vmatprep.subr.bf16.mxu0 0
    %354 = vmatpush1.bf16.msra.mxu0 0
    %355 = vmatprep.mubr.bf16.mxu0 0
    %356 = vmatmul.mubr.bf16.gmra.mrb[0].mxu0 %v318
    %v357 = vpop.f32.mrb[0].mxu0
    %v358 = vadd.f32 0.0, %v357
    %v359 = vpop.f32.mrb[0].mxu0
    %v360 = vpop.f32.mrb[0].mxu0
    %v361 = vpop.f32.mrb[0].mxu0
    %362 = vdwg.mxu0
    %v363 = vrcp.pop %v313
    %v364 = vmul.f32 %v358, %v363
    %366 = vrot.lane.b32.xlu0 %v364, 8
    %v367 = vpop.permute.xlu0 %366
    %vm369 = vcmask 130112
    %370 = vst.msk [vmem:[#allocation2] sm:$0xff] %vm369, %v367
    %371 = vrot.lane.b32.xlu0 %v137, 112
    %v372 = vpop.permute.xlu0 %371
    %373 = vrot.lane.b32.xlu0 %v137, 80
    %v374 = vpop.permute.xlu0 %373
    %v376 = vsel %vm146, %v372, 0
    %v379 = vsel %vm146, %v374, 0
    %381 = vmatprep.subr.bf16.mxu0 0
    %382 = vmatpush1.bf16.xpose.msra.mxu0 %v379
    %383 = vmatprep.subr.bf16.mxu0 0
    %384 = vmatpush1.bf16.xpose.msra.mxu0 0
    %385 = vmatprep.subr.bf16.mxu0 0
    %386 = vmatpush1.bf16.xpose.msra.mxu0 0
    %387 = vmatprep.subr.bf16.mxu0 0
    %388 = vmatpush1.bf16.xpose.msra.mxu0 0
    %389 = vmatprep.subr.bf16.mxu0 0
    %390 = vmatpush1.bf16.xpose.msra.mxu0 0
    %391 = vmatprep.subr.bf16.mxu0 0
    %392 = vmatpush1.bf16.xpose.msra.mxu0 0
    %393 = vmatprep.subr.bf16.mxu0 0
    %394 = vmatpush1.bf16.xpose.msra.mxu0 0
    %395 = vmatprep.subr.bf16.mxu0 0
    %396 = vmatpush1.bf16.xpose.msra.mxu0 0
    %397 = vmatprep.subr.bf16.mxu0 0
    %398 = vmatpush1.bf16.xpose.msra.mxu0 0
    %399 = vmatprep.subr.bf16.mxu0 0
    %400 = vmatpush1.bf16.xpose.msra.mxu0 0
    %401 = vmatprep.subr.bf16.mxu0 0
    %402 = vmatpush1.bf16.xpose.msra.mxu0 0
    %403 = vmatprep.subr.bf16.mxu0 0
    %404 = vmatpush1.bf16.xpose.msra.mxu0 0
    %405 = vmatprep.subr.bf16.mxu0 0
    %406 = vmatpush1.bf16.xpose.msra.mxu0 0
    %407 = vmatprep.subr.bf16.mxu0 0
    %408 = vmatpush1.bf16.xpose.msra.mxu0 0
    %409 = vmatprep.subr.bf16.mxu0 0
    %410 = vmatpush1.bf16.xpose.msra.mxu0 0
    %411 = vmatprep.subr.bf16.mxu0 0
    %412 = vmatpush1.bf16.xpose.msra.mxu0 0
    %413 = vmatprep.mubr.bf16.mxu0 0
    %414 = vmatmul.mubr.bf16.gmra.mrb[0].mxu0 %v376
    %v415 = vpop.f32.mrb[0].mxu0
    %v416 = vadd.f32 %v142, %v415
    %v417 = vpop.f32.mrb[0].mxu0
    %v418 = vpop.f32.mrb[0].mxu0
    %v419 = vpop.f32.mrb[0].mxu0
    %420 = vdwg.mxu0
    %v421 = vsel %vm146, %v416, -inf
    %422 = vmax.xlane.f32.xlu0 %v421
    %v423 = vpop.xlane.xlu0 %422
    %v424 = vsub.f32 %v416, %v423
    %v425 = vmul.f32 %v424, 1.442695
    %v426 = vpow.pop %v425
    %v427 = vsel %vm146, %v426, 0.0
    %428 = vadd.xlane.f32.xlu0 %v427
    %v429 = vpop.xlane.xlu0 %428
    %v430 = vpack.c.bf16 %v426, %v426
    %431 = vrot.lane.b32.xlu0 %v137, 48
    %v432 = vpop.permute.xlu0 %431
    %v434 = vsel %vm146, %v430, 0
    %v437 = vsel %vm208, %v432, 0
    %439 = vmatprep.subr.bf16.mxu0 0
    %440 = vmatpush1.bf16.msra.mxu0 %v437
    %441 = vmatprep.subr.bf16.mxu0 0
    %442 = vmatpush1.bf16.msra.mxu0 0
    %443 = vmatprep.subr.bf16.mxu0 0
    %444 = vmatpush1.bf16.msra.mxu0 0
    %445 = vmatprep.subr.bf16.mxu0 0
    %446 = vmatpush1.bf16.msra.mxu0 0
    %447 = vmatprep.subr.bf16.mxu0 0
    %448 = vmatpush1.bf16.msra.mxu0 0
    %449 = vmatprep.subr.bf16.mxu0 0
    %450 = vmatpush1.bf16.msra.mxu0 0
    %451 = vmatprep.subr.bf16.mxu0 0
    %452 = vmatpush1.bf16.msra.mxu0 0
    %453 = vmatprep.subr.bf16.mxu0 0
    %454 = vmatpush1.bf16.msra.mxu0 0
    %455 = vmatprep.subr.bf16.mxu0 0
    %456 = vmatpush1.bf16.msra.mxu0 0
    %457 = vmatprep.subr.bf16.mxu0 0
    %458 = vmatpush1.bf16.msra.mxu0 0
    %459 = vmatprep.subr.bf16.mxu0 0
    %460 = vmatpush1.bf16.msra.mxu0 0
    %461 = vmatprep.subr.bf16.mxu0 0
    %462 = vmatpush1.bf16.msra.mxu0 0
    %463 = vmatprep.subr.bf16.mxu0 0
    %464 = vmatpush1.bf16.msra.mxu0 0
    %465 = vmatprep.subr.bf16.mxu0 0
    %466 = vmatpush1.bf16.msra.mxu0 0
    %467 = vmatprep.subr.bf16.mxu0 0
    %468 = vmatpush1.bf16.msra.mxu0 0
    %469 = vmatprep.subr.bf16.mxu0 0
    %470 = vmatpush1.bf16.msra.mxu0 0
    %471 = vmatprep.mubr.bf16.mxu0 0
    %472 = vmatmul.mubr.bf16.gmra.mrb[0].mxu0 %v434
    %v473 = vpop.f32.mrb[0].mxu0
    %v474 = vadd.f32 0.0, %v473
    %v475 = vpop.f32.mrb[0].mxu0
    %v476 = vpop.f32.mrb[0].mxu0
    %v477 = vpop.f32.mrb[0].mxu0
    %478 = vdwg.mxu0
    %v479 = vrcp.pop %v429
    %v480 = vmul.f32 %v474, %v479
    %482 = vrot.lane.b32.xlu0 %v480, 16
    %v483 = vpop.permute.xlu0 %482
    %vm485 = vcmask 195712
    %486 = vst.msk [vmem:[#allocation2] sm:$0xff] %vm485, %v483
    %487 = vrot.lane.b32.xlu0 %v137, 104
    %v488 = vpop.permute.xlu0 %487
    %489 = vrot.lane.b32.xlu0 %v137, 72
    %v490 = vpop.permute.xlu0 %489
    %v492 = vsel %vm146, %v488, 0
    %v495 = vsel %vm146, %v490, 0
    %497 = vmatprep.subr.bf16.mxu0 0
    %498 = vmatpush1.bf16.xpose.msra.mxu0 %v495
    %499 = vmatprep.subr.bf16.mxu0 0
    %500 = vmatpush1.bf16.xpose.msra.mxu0 0
    %501 = vmatprep.subr.bf16.mxu0 0
    %502 = vmatpush1.bf16.xpose.msra.mxu0 0
    %503 = vmatprep.subr.bf16.mxu0 0
    %504 = vmatpush1.bf16.xpose.msra.mxu0 0
    %505 = vmatprep.subr.bf16.mxu0 0
    %506 = vmatpush1.bf16.xpose.msra.mxu0 0
    %507 = vmatprep.subr.bf16.mxu0 0
    %508 = vmatpush1.bf16.xpose.msra.mxu0 0
    %509 = vmatprep.subr.bf16.mxu0 0
    %510 = vmatpush1.bf16.xpose.msra.mxu0 0
    %511 = vmatprep.subr.bf16.mxu0 0
    %512 = vmatpush1.bf16.xpose.msra.mxu0 0
    %513 = vmatprep.subr.bf16.mxu0 0
    %514 = vmatpush1.bf16.xpose.msra.mxu0 0
    %515 = vmatprep.subr.bf16.mxu0 0
    %516 = vmatpush1.bf16.xpose.msra.mxu0 0
    %517 = vmatprep.subr.bf16.mxu0 0
    %518 = vmatpush1.bf16.xpose.msra.mxu0 0
    %519 = vmatprep.subr.bf16.mxu0 0
    %520 = vmatpush1.bf16.xpose.msra.mxu0 0
    %521 = vmatprep.subr.bf16.mxu0 0
    %522 = vmatpush1.bf16.xpose.msra.mxu0 0
    %523 = vmatprep.subr.bf16.mxu0 0
    %524 = vmatpush1.bf16.xpose.msra.mxu0 0
    %525 = vmatprep.subr.bf16.mxu0 0
    %526 = vmatpush1.bf16.xpose.msra.mxu0 0
    %527 = vmatprep.subr.bf16.mxu0 0
    %528 = vmatpush1.bf16.xpose.msra.mxu0 0
    %529 = vmatprep.mubr.bf16.mxu0 0
    %530 = vmatmul.mubr.bf16.gmra.mrb[0].mxu0 %v492
    %v531 = vpop.f32.mrb[0].mxu0
    %v532 = vadd.f32 %v142, %v531
    %v533 = vpop.f32.mrb[0].mxu0
    %v534 = vpop.f32.mrb[0].mxu0
    %v535 = vpop.f32.mrb[0].mxu0
    %536 = vdwg.mxu0
    %v537 = vsel %vm146, %v532, -inf
    %538 = vmax.xlane.f32.xlu0 %v537
    %v539 = vpop.xlane.xlu0 %538
    %v540 = vsub.f32 %v532, %v539
    %v541 = vmul.f32 %v540, 1.442695
    %v542 = vpow.pop %v541
    %v543 = vsel %vm146, %v542, 0.0
    %544 = vadd.xlane.f32.xlu0 %v543
    %v545 = vpop.xlane.xlu0 %544
    %v546 = vpack.c.bf16 %v542, %v542
    %547 = vrot.lane.b32.xlu0 %v137, 40
    %v548 = vpop.permute.xlu0 %547
    %v550 = vsel %vm146, %v546, 0
    %v553 = vsel %vm208, %v548, 0
    %555 = vmatprep.subr.bf16.mxu0 0
    %556 = vmatpush1.bf16.msra.mxu0 %v553
    %557 = vmatprep.subr.bf16.mxu0 0
    %558 = vmatpush1.bf16.msra.mxu0 0
    %559 = vmatprep.subr.bf16.mxu0 0
    %560 = vmatpush1.bf16.msra.mxu0 0
    %561 = vmatprep.subr.bf16.mxu0 0
    %562 = vmatpush1.bf16.msra.mxu0 0
    %563 = vmatprep.subr.bf16.mxu0 0
    %564 = vmatpush1.bf16.msra.mxu0 0
    %565 = vmatprep.subr.bf16.mxu0 0
    %566 = vmatpush1.bf16.msra.mxu0 0
    %567 = vmatprep.subr.bf16.mxu0 0
    %568 = vmatpush1.bf16.msra.mxu0 0
    %569 = vmatprep.subr.bf16.mxu0 0
    %570 = vmatpush1.bf16.msra.mxu0 0
    %571 = vmatprep.subr.bf16.mxu0 0
    %572 = vmatpush1.bf16.msra.mxu0 0
    %573 = vmatprep.subr.bf16.mxu0 0
    %574 = vmatpush1.bf16.msra.mxu0 0
    %575 = vmatprep.subr.bf16.mxu0 0
    %576 = vmatpush1.bf16.msra.mxu0 0
    %577 = vmatprep.subr.bf16.mxu0 0
    %578 = vmatpush1.bf16.msra.mxu0 0
    %579 = vmatprep.subr.bf16.mxu0 0
    %580 = vmatpush1.bf16.msra.mxu0 0
    %581 = vmatprep.subr.bf16.mxu0 0
    %582 = vmatpush1.bf16.msra.mxu0 0
    %583 = vmatprep.subr.bf16.mxu0 0
    %584 = vmatpush1.bf16.msra.mxu0 0
    %585 = vmatprep.subr.bf16.mxu0 0
    %586 = vmatpush1.bf16.msra.mxu0 0
    %587 = vmatprep.mubr.bf16.mxu0 0
    %588 = vmatmul.mubr.bf16.gmra.mrb[0].mxu0 %v550
    %v589 = vpop.f32.mrb[0].mxu0
    %v590 = vadd.f32 0.0, %v589
    %v591 = vpop.f32.mrb[0].mxu0
    %v592 = vpop.f32.mrb[0].mxu0
    %v593 = vpop.f32.mrb[0].mxu0
    %594 = vdwg.mxu0
    %v595 = vrcp.pop %v545
    %v596 = vmul.f32 %v590, %v595
    %598 = vrot.lane.b32.xlu0 %v596, 24
    %v599 = vpop.permute.xlu0 %598
    %vm601 = vcmask 261312
    %602 = vst.msk [vmem:[#allocation2] sm:$0xff] %vm601, %v599
    %v603 = vlaneseq
    %v604 = vshrl.u32 %v603, 7
    %v605 = vsub.s32 1, %v604
    %v606 = vrot.slane %v138, %v605
    %v607 = vrot.slane %v137, 4
    %608 = vrot.lane.b32.xlu0 %v607, 96
    %v609 = vpop.permute.xlu0 %608
    %v611 = vsel %vm146, %v607, 0
    %v614 = vsel %vm146, %v609, 0
    %616 = vmatprep.subr.bf16.mxu0 0
    %617 = vmatpush1.bf16.xpose.msra.mxu0 %v614
    %618 = vmatprep.subr.bf16.mxu0 0
    %619 = vmatpush1.bf16.xpose.msra.mxu0 0
    %620 = vmatprep.subr.bf16.mxu0 0
    %621 = vmatpush1.bf16.xpose.msra.mxu0 0
    %622 = vmatprep.subr.bf16.mxu0 0
    %623 = vmatpush1.bf16.xpose.msra.mxu0 0
    %624 = vmatprep.subr.bf16.mxu0 0
    %625 = vmatpush1.bf16.xpose.msra.mxu0 0
    %626 = vmatprep.subr.bf16.mxu0 0
    %627 = vmatpush1.bf16.xpose.msra.mxu0 0
    %628 = vmatprep.subr.bf16.mxu0 0
    %629 = vmatpush1.bf16.xpose.msra.mxu0 0
    %630 = vmatprep.subr.bf16.mxu0 0
    %631 = vmatpush1.bf16.xpose.msra.mxu0 0
    %632 = vmatprep.subr.bf16.mxu0 0
    %633 = vmatpush1.bf16.xpose.msra.mxu0 0
    %634 = vmatprep.subr.bf16.mxu0 0
    %635 = vmatpush1.bf16.xpose.msra.mxu0 0
    %636 = vmatprep.subr.bf16.mxu0 0
    %637 = vmatpush1.bf16.xpose.msra.mxu0 0
    %638 = vmatprep.subr.bf16.mxu0 0
    %639 = vmatpush1.bf16.xpose.msra.mxu0 0
    %640 = vmatprep.subr.bf16.mxu0 0
    %641 = vmatpush1.bf16.xpose.msra.mxu0 0
    %642 = vmatprep.subr.bf16.mxu0 0
    %643 = vmatpush1.bf16.xpose.msra.mxu0 0
    %644 = vmatprep.subr.bf16.mxu0 0
    %645 = vmatpush1.bf16.xpose.msra.mxu0 0
    %646 = vmatprep.subr.bf16.mxu0 0
    %647 = vmatpush1.bf16.xpose.msra.mxu0 0
    %648 = vmatprep.mubr.bf16.mxu0 0
    %649 = vmatmul.mubr.bf16.gmra.mrb[0].mxu0 %v611
    %v650 = vpop.f32.mrb[0].mxu0
    %v651 = vadd.f32 %v606, %v650
    %v652 = vpop.f32.mrb[0].mxu0
    %v653 = vpop.f32.mrb[0].mxu0
    %v654 = vpop.f32.mrb[0].mxu0
    %655 = vdwg.mxu0
    %v656 = vsel %vm146, %v651, -inf
    %657 = vmax.xlane.f32.xlu0 %v656
    %v658 = vpop.xlane.xlu0 %657
    %v659 = vsub.f32 %v651, %v658
    %v660 = vmul.f32 %v659, 1.442695
    %v661 = vpow.pop %v660
    %v662 = vsel %vm146, %v661, 0.0
    %663 = vadd.xlane.f32.xlu0 %v662
    %v664 = vpop.xlane.xlu0 %663
    %v665 = vpack.c.bf16 %v661, %v661
    %666 = vrot.lane.b32.xlu0 %v607, 64
    %v667 = vpop.permute.xlu0 %666
    %v669 = vsel %vm146, %v665, 0
    %v672 = vsel %vm208, %v667, 0
    %674 = vmatprep.subr.bf16.mxu0 0
    %675 = vmatpush1.bf16.msra.mxu0 %v672
    %676 = vmatprep.subr.bf16.mxu0 0
    %677 = vmatpush1.bf16.msra.mxu0 0
    %678 = vmatprep.subr.bf16.mxu0 0
    %679 = vmatpush1.bf16.msra.mxu0 0
    %680 = vmatprep.subr.bf16.mxu0 0
    %681 = vmatpush1.bf16.msra.mxu0 0
    %682 = vmatprep.subr.bf16.mxu0 0
    %683 = vmatpush1.bf16.msra.mxu0 0
    %684 = vmatprep.subr.bf16.mxu0 0
    %685 = vmatpush1.bf16.msra.mxu0 0
    %686 = vmatprep.subr.bf16.mxu0 0
    %687 = vmatpush1.bf16.msra.mxu0 0
    %688 = vmatprep.subr.bf16.mxu0 0
    %689 = vmatpush1.bf16.msra.mxu0 0
    %690 = vmatprep.subr.bf16.mxu0 0
    %691 = vmatpush1.bf16.msra.mxu0 0
    %692 = vmatprep.subr.bf16.mxu0 0
    %693 = vmatpush1.bf16.msra.mxu0 0
    %694 = vmatprep.subr.bf16.mxu0 0
    %695 = vmatpush1.bf16.msra.mxu0 0
    %696 = vmatprep.subr.bf16.mxu0 0
    %697 = vmatpush1.bf16.msra.mxu0 0
    %698 = vmatprep.subr.bf16.mxu0 0
    %699 = vmatpush1.bf16.msra.mxu0 0
    %700 = vmatprep.subr.bf16.mxu0 0
    %701 = vmatpush1.bf16.msra.mxu0 0
    %702 = vmatprep.subr.bf16.mxu0 0
    %703 = vmatpush1.bf16.msra.mxu0 0
    %704 = vmatprep.subr.bf16.mxu0 0
    %705 = vmatpush1.bf16.msra.mxu0 0
    %706 = vmatprep.mubr.bf16.mxu0 0
    %707 = vmatmul.mubr.bf16.gmra.mrb[0].mxu0 %v669
    %v708 = vpop.f32.mrb[0].mxu0
    %v709 = vadd.f32 0.0, %v708
    %v710 = vpop.f32.mrb[0].mxu0
    %v711 = vpop.f32.mrb[0].mxu0
    %v712 = vpop.f32.mrb[0].mxu0
    %713 = vdwg.mxu0
    %v714 = vrcp.pop %v664
    %v715 = vmul.f32 %v709, %v714
    %716 = vst.msk [vmem:[#allocation2 + $0x8] sm:$0xff] %vm146, %v715
    %717 = vrot.lane.b32.xlu0 %v607, 120
    %v718 = vpop.permute.xlu0 %717
    %719 = vrot.lane.b32.xlu0 %v607, 88
    %v720 = vpop.permute.xlu0 %719
    %v722 = vsel %vm146, %v718, 0
    %v725 = vsel %vm146, %v720, 0
    %727 = vmatprep.subr.bf16.mxu0 0
    %728 = vmatpush1.bf16.xpose.msra.mxu0 %v725
    %729 = vmatprep.subr.bf16.mxu0 0
    %730 = vmatpush1.bf16.xpose.msra.mxu0 0
    %731 = vmatprep.subr.bf16.mxu0 0
    %732 = vmatpush1.bf16.xpose.msra.mxu0 0
    %733 = vmatprep.subr.bf16.mxu0 0
    %734 = vmatpush1.bf16.xpose.msra.mxu0 0
    %735 = vmatprep.subr.bf16.mxu0 0
    %736 = vmatpush1.bf16.xpose.msra.mxu0 0
    %737 = vmatprep.subr.bf16.mxu0 0
    %738 = vmatpush1.bf16.xpose.msra.mxu0 0
    %739 = vmatprep.subr.bf16.mxu0 0
    %740 = vmatpush1.bf16.xpose.msra.mxu0 0
    %741 = vmatprep.subr.bf16.mxu0 0
    %742 = vmatpush1.bf16.xpose.msra.mxu0 0
    %743 = vmatprep.subr.bf16.mxu0 0
    %744 = vmatpush1.bf16.xpose.msra.mxu0 0
    %745 = vmatprep.subr.bf16.mxu0 0
    %746 = vmatpush1.bf16.xpose.msra.mxu0 0
    %747 = vmatprep.subr.bf16.mxu0 0
    %748 = vmatpush1.bf16.xpose.msra.mxu0 0
    %749 = vmatprep.subr.bf16.mxu0 0
    %750 = vmatpush1.bf16.xpose.msra.mxu0 0
    %751 = vmatprep.subr.bf16.mxu0 0
    %752 = vmatpush1.bf16.xpose.msra.mxu0 0
    %753 = vmatprep.subr.bf16.mxu0 0
    %754 = vmatpush1.bf16.xpose.msra.mxu0 0
    %755 = vmatprep.subr.bf16.mxu0 0
    %756 = vmatpush1.bf16.xpose.msra.mxu0 0
    %757 = vmatprep.subr.bf16.mxu0 0
    %758 = vmatpush1.bf16.xpose.msra.mxu0 0
    %759 = vmatprep.mubr.bf16.mxu0 0
    %760 = vmatmul.mubr.bf16.gmra.mrb[0].mxu0 %v722
    %v761 = vpop.f32.mrb[0].mxu0
    %v762 = vadd.f32 %v606, %v761
    %v763 = vpop.f32.mrb[0].mxu0
    %v764 = vpop.f32.mrb[0].mxu0
    %v765 = vpop.f32.mrb[0].mxu0
    %766 = vdwg.mxu0
    %v767 = vsel %vm146, %v762, -inf
    %768 = vmax.xlane.f32.xlu0 %v767
    %v769 = vpop.xlane.xlu0 %768
    %v770 = vsub.f32 %v762, %v769
    %v771 = vmul.f32 %v770, 1.442695
    %v772 = vpow.pop %v771
    %v773 = vsel %vm146, %v772, 0.0
    %774 = vadd.xlane.f32.xlu0 %v773
    %v775 = vpop.xlane.xlu0 %774
    %v776 = vpack.c.bf16 %v772, %v772
    %777 = vrot.lane.b32.xlu0 %v607, 56
    %v778 = vpop.permute.xlu0 %777
    %v780 = vsel %vm146, %v776, 0
    %v783 = vsel %vm208, %v778, 0
    %785 = vmatprep.subr.bf16.mxu0 0
    %786 = vmatpush1.bf16.msra.mxu0 %v783
    %787 = vmatprep.subr.bf16.mxu0 0
    %788 = vmatpush1.bf16.msra.mxu0 0
    %789 = vmatprep.subr.bf16.mxu0 0
    %790 = vmatpush1.bf16.msra.mxu0 0
    %791 = vmatprep.subr.bf16.mxu0 0
    %792 = vmatpush1.bf16.msra.mxu0 0
    %793 = vmatprep.subr.bf16.mxu0 0
    %794 = vmatpush1.bf16.msra.mxu0 0
    %795 = vmatprep.subr.bf16.mxu0 0
    %796 = vmatpush1.bf16.msra.mxu0 0
    %797 = vmatprep.subr.bf16.mxu0 0
    %798 = vmatpush1.bf16.msra.mxu0 0
    %799 = vmatprep.subr.bf16.mxu0 0
    %800 = vmatpush1.bf16.msra.mxu0 0
    %801 = vmatprep.subr.bf16.mxu0 0
    %802 = vmatpush1.bf16.msra.mxu0 0
    %803 = vmatprep.subr.bf16.mxu0 0
    %804 = vmatpush1.bf16.msra.mxu0 0
    %805 = vmatprep.subr.bf16.mxu0 0
    %806 = vmatpush1.bf16.msra.mxu0 0
    %807 = vmatprep.subr.bf16.mxu0 0
    %808 = vmatpush1.bf16.msra.mxu0 0
    %809 = vmatprep.subr.bf16.mxu0 0
    %810 = vmatpush1.bf16.msra.mxu0 0
    %811 = vmatprep.subr.bf16.mxu0 0
    %812 = vmatpush1.bf16.msra.mxu0 0
    %813 = vmatprep.subr.bf16.mxu0 0
    %814 = vmatpush1.bf16.msra.mxu0 0
    %815 = vmatprep.subr.bf16.mxu0 0
    %816 = vmatpush1.bf16.msra.mxu0 0
    %817 = vmatprep.mubr.bf16.mxu0 0
    %818 = vmatmul.mubr.bf16.gmra.mrb[0].mxu0 %v780
    %v819 = vpop.f32.mrb[0].mxu0
    %v820 = vadd.f32 0.0, %v819
    %v821 = vpop.f32.mrb[0].mxu0
    %v822 = vpop.f32.mrb[0].mxu0
    %v823 = vpop.f32.mrb[0].mxu0
    %824 = vdwg.mxu0
    %v825 = vrcp.pop %v775
    %v826 = vmul.f32 %v820, %v825
    %828 = vrot.lane.b32.xlu0 %v826, 8
    %v829 = vpop.permute.xlu0 %828
    %831 = vst.msk [vmem:[#allocation2 + $0x8] sm:$0xff] %vm369, %v829
    %832 = vrot.lane.b32.xlu0 %v607, 112
    %v833 = vpop.permute.xlu0 %832
    %834 = vrot.lane.b32.xlu0 %v607, 80
    %v835 = vpop.permute.xlu0 %834
    %v837 = vsel %vm146, %v833, 0
    %v840 = vsel %vm146, %v835, 0
    %842 = vmatprep.subr.bf16.mxu0 0
    %843 = vmatpush1.bf16.xpose.msra.mxu0 %v840
    %844 = vmatprep.subr.bf16.mxu0 0
    %845 = vmatpush1.bf16.xpose.msra.mxu0 0
    %846 = vmatprep.subr.bf16.mxu0 0
    %847 = vmatpush1.bf16.xpose.msra.mxu0 0
    %848 = vmatprep.subr.bf16.mxu0 0
    %849 = vmatpush1.bf16.xpose.msra.mxu0 0
    %850 = vmatprep.subr.bf16.mxu0 0
    %851 = vmatpush1.bf16.xpose.msra.mxu0 0
    %852 = vmatprep.subr.bf16.mxu0 0
    %853 = vmatpush1.bf16.xpose.msra.mxu0 0
    %854 = vmatprep.subr.bf16.mxu0 0
    %855 = vmatpush1.bf16.xpose.msra.mxu0 0
    %856 = vmatprep.subr.bf16.mxu0 0
    %857 = vmatpush1.bf16.xpose.msra.mxu0 0
    %858 = vmatprep.subr.bf16.mxu0 0
    %859 = vmatpush1.bf16.xpose.msra.mxu0 0
    %860 = vmatprep.subr.bf16.mxu0 0
    %861 = vmatpush1.bf16.xpose.msra.mxu0 0
    %862 = vmatprep.subr.bf16.mxu0 0
    %863 = vmatpush1.bf16.xpose.msra.mxu0 0
    %864 = vmatprep.subr.bf16.mxu0 0
    %865 = vmatpush1.bf16.xpose.msra.mxu0 0
    %866 = vmatprep.subr.bf16.mxu0 0
    %867 = vmatpush1.bf16.xpose.msra.mxu0 0
    %868 = vmatprep.subr.bf16.mxu0 0
    %869 = vmatpush1.bf16.xpose.msra.mxu0 0
    %870 = vmatprep.subr.bf16.mxu0 0
    %871 = vmatpush1.bf16.xpose.msra.mxu0 0
    %872 = vmatprep.subr.bf16.mxu0 0
    %873 = vmatpush1.bf16.xpose.msra.mxu0 0
    %874 = vmatprep.mubr.bf16.mxu0 0
    %875 = vmatmul.mubr.bf16.gmra.mrb[0].mxu0 %v837
    %v876 = vpop.f32.mrb[0].mxu0
    %v877 = vadd.f32 %v606, %v876
    %v878 = vpop.f32.mrb[0].mxu0
    %v879 = vpop.f32.mrb[0].mxu0
    %v880 = vpop.f32.mrb[0].mxu0
    %881 = vdwg.mxu0
    %v882 = vsel %vm146, %v877, -inf
    %883 = vmax.xlane.f32.xlu0 %v882
    %v884 = vpop.xlane.xlu0 %883
    %v885 = vsub.f32 %v877, %v884
    %v886 = vmul.f32 %v885, 1.442695
    %v887 = vpow.pop %v886
    %v888 = vsel %vm146, %v887, 0.0
    %889 = vadd.xlane.f32.xlu0 %v888
    %v890 = vpop.xlane.xlu0 %889
    %v891 = vpack.c.bf16 %v887, %v887
    %892 = vrot.lane.b32.xlu0 %v607, 48
    %v893 = vpop.permute.xlu0 %892
    %v895 = vsel %vm146, %v891, 0
    %v898 = vsel %vm208, %v893, 0
    %900 = vmatprep.subr.bf16.mxu0 0
    %901 = vmatpush1.bf16.msra.mxu0 %v898
    %902 = vmatprep.subr.bf16.mxu0 0
    %903 = vmatpush1.bf16.msra.mxu0 0
    %904 = vmatprep.subr.bf16.mxu0 0
    %905 = vmatpush1.bf16.msra.mxu0 0
    %906 = vmatprep.subr.bf16.mxu0 0
    %907 = vmatpush1.bf16.msra.mxu0 0
    %908 = vmatprep.subr.bf16.mxu0 0
    %909 = vmatpush1.bf16.msra.mxu0 0
    %910 = vmatprep.subr.bf16.mxu0 0
    %911 = vmatpush1.bf16.msra.mxu0 0
    %912 = vmatprep.subr.bf16.mxu0 0
    %913 = vmatpush1.bf16.msra.mxu0 0
    %914 = vmatprep.subr.bf16.mxu0 0
    %915 = vmatpush1.bf16.msra.mxu0 0
    %916 = vmatprep.subr.bf16.mxu0 0
    %917 = vmatpush1.bf16.msra.mxu0 0
    %918 = vmatprep.subr.bf16.mxu0 0
    %919 = vmatpush1.bf16.msra.mxu0 0
    %920 = vmatprep.subr.bf16.mxu0 0
    %921 = vmatpush1.bf16.msra.mxu0 0
    %922 = vmatprep.subr.bf16.mxu0 0
    %923 = vmatpush1.bf16.msra.mxu0 0
    %924 = vmatprep.subr.bf16.mxu0 0
    %925 = vmatpush1.bf16.msra.mxu0 0
    %926 = vmatprep.subr.bf16.mxu0 0
    %927 = vmatpush1.bf16.msra.mxu0 0
    %928 = vmatprep.subr.bf16.mxu0 0
    %929 = vmatpush1.bf16.msra.mxu0 0
    %930 = vmatprep.subr.bf16.mxu0 0
    %931 = vmatpush1.bf16.msra.mxu0 0
    %932 = vmatprep.mubr.bf16.mxu0 0
    %933 = vmatmul.mubr.bf16.gmra.mrb[0].mxu0 %v895
    %v934 = vpop.f32.mrb[0].mxu0
    %v935 = vadd.f32 0.0, %v934
    %v936 = vpop.f32.mrb[0].mxu0
    %v937 = vpop.f32.mrb[0].mxu0
    %v938 = vpop.f32.mrb[0].mxu0
    %939 = vdwg.mxu0
    %v940 = vrcp.pop %v890
    %v941 = vmul.f32 %v935, %v940
    %943 = vrot.lane.b32.xlu0 %v941, 16
    %v944 = vpop.permute.xlu0 %943
    %946 = vst.msk [vmem:[#allocation2 + $0x8] sm:$0xff] %vm485, %v944
    %947 = vrot.lane.b32.xlu0 %v607, 104
    %v948 = vpop.permute.xlu0 %947
    %949 = vrot.lane.b32.xlu0 %v607, 72
    %v950 = vpop.permute.xlu0 %949
    %v952 = vsel %vm146, %v948, 0
    %v955 = vsel %vm146, %v950, 0
    %957 = vmatprep.subr.bf16.mxu0 0
    %958 = vmatpush1.bf16.xpose.msra.mxu0 %v955
    %959 = vmatprep.subr.bf16.mxu0 0
    %960 = vmatpush1.bf16.xpose.msra.mxu0 0
    %961 = vmatprep.subr.bf16.mxu0 0
    %962 = vmatpush1.bf16.xpose.msra.mxu0 0
    %963 = vmatprep.subr.bf16.mxu0 0
    %964 = vmatpush1.bf16.xpose.msra.mxu0 0
    %965 = vmatprep.subr.bf16.mxu0 0
    %966 = vmatpush1.bf16.xpose.msra.mxu0 0
    %967 = vmatprep.subr.bf16.mxu0 0
    %968 = vmatpush1.bf16.xpose.msra.mxu0 0
    %969 = vmatprep.subr.bf16.mxu0 0
    %970 = vmatpush1.bf16.xpose.msra.mxu0 0
    %971 = vmatprep.subr.bf16.mxu0 0
    %972 = vmatpush1.bf16.xpose.msra.mxu0 0
    %973 = vmatprep.subr.bf16.mxu0 0
    %974 = vmatpush1.bf16.xpose.msra.mxu0 0
    %975 = vmatprep.subr.bf16.mxu0 0
    %976 = vmatpush1.bf16.xpose.msra.mxu0 0
    %977 = vmatprep.subr.bf16.mxu0 0
    %978 = vmatpush1.bf16.xpose.msra.mxu0 0
    %979 = vmatprep.subr.bf16.mxu0 0
    %980 = vmatpush1.bf16.xpose.msra.mxu0 0
    %981 = vmatprep.subr.bf16.mxu0 0
    %982 = vmatpush1.bf16.xpose.msra.mxu0 0
    %983 = vmatprep.subr.bf16.mxu0 0
    %984 = vmatpush1.bf16.xpose.msra.mxu0 0
    %985 = vmatprep.subr.bf16.mxu0 0
    %986 = vmatpush1.bf16.xpose.msra.mxu0 0
    %987 = vmatprep.subr.bf16.mxu0 0
    %988 = vmatpush1.bf16.xpose.msra.mxu0 0
    %989 = vmatprep.mubr.bf16.mxu0 0
    %990 = vmatmul.mubr.bf16.gmra.mrb[0].mxu0 %v952
    %v991 = vpop.f32.mrb[0].mxu0
    %v992 = vadd.f32 %v606, %v991
    %v993 = vpop.f32.mrb[0].mxu0
    %v994 = vpop.f32.mrb[0].mxu0
    %v995 = vpop.f32.mrb[0].mxu0
    %996 = vdwg.mxu0
    %v997 = vsel %vm146, %v992, -inf
    %998 = vmax.xlane.f32.xlu0 %v997
    %v999 = vpop.xlane.xlu0 %998
    %v1000 = vsub.f32 %v992, %v999
    %v1001 = vmul.f32 %v1000, 1.442695
    %v1002 = vpow.pop %v1001
    %v1003 = vsel %vm146, %v1002, 0.0
    %1004 = vadd.xlane.f32.xlu0 %v1003
    %v1005 = vpop.xlane.xlu0 %1004
    %v1006 = vpack.c.bf16 %v1002, %v1002
    %1007 = vrot.lane.b32.xlu0 %v607, 40
    %v1008 = vpop.permute.xlu0 %1007
    %v1010 = vsel %vm146, %v1006, 0
    %v1013 = vsel %vm208, %v1008, 0
    %1015 = vmatprep.subr.bf16.mxu0 0
    %1016 = vmatpush1.bf16.msra.mxu0 %v1013
    %1017 = vmatprep.subr.bf16.mxu0 0
    %1018 = vmatpush1.bf16.msra.mxu0 0
    %1019 = vmatprep.subr.bf16.mxu0 0
    %1020 = vmatpush1.bf16.msra.mxu0 0
    %1021 = vmatprep.subr.bf16.mxu0 0
    %1022 = vmatpush1.bf16.msra.mxu0 0
    %1023 = vmatprep.subr.bf16.mxu0 0
    %1024 = vmatpush1.bf16.msra.mxu0 0
    %1025 = vmatprep.subr.bf16.mxu0 0
    %1026 = vmatpush1.bf16.msra.mxu0 0
    %1027 = vmatprep.subr.bf16.mxu0 0
    %1028 = vmatpush1.bf16.msra.mxu0 0
    %1029 = vmatprep.subr.bf16.mxu0 0
    %1030 = vmatpush1.bf16.msra.mxu0 0
    %1031 = vmatprep.subr.bf16.mxu0 0
    %1032 = vmatpush1.bf16.msra.mxu0 0
    %1033 = vmatprep.subr.bf16.mxu0 0
    %1034 = vmatpush1.bf16.msra.mxu0 0
    %1035 = vmatprep.subr.bf16.mxu0 0
    %1036 = vmatpush1.bf16.msra.mxu0 0
    %1037 = vmatprep.subr.bf16.mxu0 0
    %1038 = vmatpush1.bf16.msra.mxu0 0
    %1039 = vmatprep.subr.bf16.mxu0 0
    %1040 = vmatpush1.bf16.msra.mxu0 0
    %1041 = vmatprep.subr.bf16.mxu0 0
    %1042 = vmatpush1.bf16.msra.mxu0 0
    %1043 = vmatprep.subr.bf16.mxu0 0
    %1044 = vmatpush1.bf16.msra.mxu0 0
    %1045 = vmatprep.subr.bf16.mxu0 0
    %1046 = vmatpush1.bf16.msra.mxu0 0
    %1047 = vmatprep.mubr.bf16.mxu0 0
    %1048 = vmatmul.mubr.bf16.gmra.mrb[0].mxu0 %v1010
    %v1049 = vpop.f32.mrb[0].mxu0
    %v1050 = vadd.f32 0.0, %v1049
    %v1051 = vpop.f32.mrb[0].mxu0
    %v1052 = vpop.f32.mrb[0].mxu0
    %v1053 = vpop.f32.mrb[0].mxu0
    %1054 = vdwg.mxu0
    %v1055 = vrcp.pop %v1005
    %v1056 = vmul.f32 %v1050, %v1055
    %1058 = vrot.lane.b32.xlu0 %v1056, 24
    %v1059 = vpop.permute.xlu0 %1058
    %1061 = vst.msk [vmem:[#allocation2 + $0x8] sm:$0xff] %vm601, %v1059
    %v1062 = vld [vmem:[#allocation2] sm:$0xff]
    %v1063 = vld [vmem:[#allocation2 + $0x8] sm:$0xff]
    %v1064 = vpack.c.bf16 %v1063, %v1062
    %v1065 = vld [vmem:[#allocation8] sm:$0xf]
    %v1066 = vld [vmem:[#allocation8 + $0x4] sm:$0xf]
    %v1067 = vld [vmem:[#allocation8 + $0x8] sm:$0xf]
    %v1068 = vld [vmem:[#allocation8 + $0xc] sm:$0xf]
    %v1069 = vld [vmem:[%s5] sm:$0x1]
    %v1070 = vlaneseq
    %v1071 = vshrl.u32 %v1070, 7
    %v1072 = vsub.s32 0, %v1071
    %v1073 = vrot.slane %v1069, %v1072
    %v1078 = vunpack.c.l.b16 %v1065
    %v1079 = vunpack.c.l.b16 %v1066
    %v1080 = vunpack.c.l.b16 %v1067
    %v1081 = vunpack.c.l.b16 %v1068
    %v1082 = vpack.c.b16 %v1079, %v1078
    %v1083 = vpack.c.b16 %v1081, %v1080
    %v1087 = vsel %vm92, %v1064, 0
    %1089 = vmatprep.subr.bf16.mxu0 0
    %1090 = vmatpush1.bf16.msra.mxu0 %v1082
    %1091 = vmatprep.subr.bf16.mxu0 0
    %1092 = vmatpush1.bf16.msra.mxu0 %v1083
    %1093 = vmatprep.subr.bf16.mxu0 0
    %1094 = vmatpush1.bf16.msra.mxu0 0
    %1095 = vmatprep.subr.bf16.mxu0 0
    %1096 = vmatpush1.bf16.msra.mxu0 0
    %1097 = vmatprep.subr.bf16.mxu0 0
    %1098 = vmatpush1.bf16.msra.mxu0 0
    %1099 = vmatprep.subr.bf16.mxu0 0
    %1100 = vmatpush1.bf16.msra.mxu0 0
    %1101 = vmatprep.subr.bf16.mxu0 0
    %1102 = vmatpush1.bf16.msra.mxu0 0
    %1103 = vmatprep.subr.bf16.mxu0 0
    %1104 = vmatpush1.bf16.msra.mxu0 0
    %1105 = vmatprep.subr.bf16.mxu0 0
    %1106 = vmatpush1.bf16.msra.mxu0 0
    %1107 = vmatprep.subr.bf16.mxu0 0
    %1108 = vmatpush1.bf16.msra.mxu0 0
    %1109 = vmatprep.subr.bf16.mxu0 0
    %1110 = vmatpush1.bf16.msra.mxu0 0
    %1111 = vmatprep.subr.bf16.mxu0 0
    %1112 = vmatpush1.bf16.msra.mxu0 0
    %1113 = vmatprep.subr.bf16.mxu0 0
    %1114 = vmatpush1.bf16.msra.mxu0 0
    %1115 = vmatprep.subr.bf16.mxu0 0
    %1116 = vmatpush1.bf16.msra.mxu0 0
    %1117 = vmatprep.subr.bf16.mxu0 0
    %1118 = vmatpush1.bf16.msra.mxu0 0
    %1119 = vmatprep.subr.bf16.mxu0 0
    %1120 = vmatpush1.bf16.msra.mxu0 0
    %1121 = vmatprep.mubr.bf16.mxu0 0
    %1122 = vmatmul.mubr.bf16.gmra.mrb[0].mxu0 %v1087
    %v1123 = vpop.f32.mrb[0].mxu0
    %v1124 = vadd.f32 %v1073, %v1123
    %v1125 = vpop.f32.mrb[0].mxu0
    %v1126 = vpop.f32.mrb[0].mxu0
    %v1127 = vadd.f32 %v1073, %v1126
    %v1128 = vpop.f32.mrb[0].mxu0
    %1129 = vdwg.mxu0
    %v1130 = vadd.f32 %v1124, %v66
    %v1131 = vadd.f32 %v1127, %v67
    %v1132 = vsel %vm92, %v1130, 0.0
    %1133 = vadd.xlane.f32.xlu0 %v1132
    %v1134 = vpop.xlane.xlu0 %1133
    %v1135 = vsel %vm92, %v1131, 0.0
    %1136 = vadd.xlane.f32.xlu0 %v1135
    %v1137 = vpop.xlane.xlu0 %1136
    %v1138 = vrcp.pop 32.0
    %v1139 = vmul.f32 %v1134, %v1138
    %v1140 = vmul.f32 %v1137, %v1138
    %v1141 = vsub.f32 %v1130, %v1139
    %v1142 = vsub.f32 %v1131, %v1140
    %v1143 = vmul.f32 %v1141, %v1141
    %v1144 = vmul.f32 %v1142, %v1142
    %v1145 = vsel %vm92, %v1143, 0.0
    %1146 = vadd.xlane.f32.xlu0 %v1145
    %v1147 = vpop.xlane.xlu0 %1146
    %v1148 = vsel %vm92, %v1144, 0.0
    %1149 = vadd.xlane.f32.xlu0 %v1148
    %v1150 = vpop.xlane.xlu0 %1149
    %v1151 = vmul.f32 %v1147, %v1138
    %v1152 = vmul.f32 %v1150, %v1138
    %v1153 = vadd.f32 %v1151, 1e-12
    %v1154 = vadd.f32 %v1152, 1e-12
    %v1155 = vrsqrt.pop %v1153
    %v1156 = vrsqrt.pop %v1154
    %v1157 = vmul.f32 %v1141, %v1155
    %v1158 = vmul.f32 %v1142, %v1156
    %v1159 = vld [vmem:[%s5 + $0x1] sm:$0x1]
    %v1160 = vlaneseq
    %v1161 = vshrl.u32 %v1160, 7
    %v1162 = vsub.s32 0, %v1161
    %v1163 = vrot.slane %v1159, %v1162
    %v1164 = vmul.f32 %v1157, %v1163
    %v1165 = vmul.f32 %v1158, %v1163
    %v1166 = vld [vmem:[%s5 + $0x2] sm:$0x1]
    %v1167 = vlaneseq
    %v1168 = vshrl.u32 %v1167, 7
    %v1169 = vsub.s32 0, %v1168
    %v1170 = vrot.slane %v1166, %v1169
    %v1171 = vadd.f32 %v1164, %v1170
    %v1172 = vadd.f32 %v1165, %v1170
    %1173 = vst.msk [vmem:[#allocation9] sm:$0xff] %vm92, %v1171
    %1174 = vst.msk [vmem:[#allocation9 + $0x8] sm:$0xff] %vm92, %v1172
    // Predicated region
    $region38: #{tpu_custom_call.1} parent=1 // pred_check
      _
    $region39: #{tpu_custom_call.1} parent=1 // pred_check_branch
      %1176 = sbr.rel (0) target = $region41
    $region40: #{tpu_custom_call.1} parent=1 // pred_region
      %s1178 = ssub.s32 256, 256
      %1179 = vsyncadd [#allocation5], %s1178
      %s1180 = sshll.u32 [#allocation9], 4
      %s1181 = int_to_ptr.vmem [resolvable:$true] %s1180
      %1186 = dma.vmem_to_hbm [thread:$0]  %s1181, 256, %s6, [#allocation5], 128, 128, 8
    $region41: #{tpu_custom_call.1} parent=1 // pred_fallthru
      _
    // Predicated region
    $region42: #{tpu_custom_call.1} parent=1 // pred_check
      _
    $region43: #{tpu_custom_call.1} parent=1 // pred_check_branch
      %1188 = sbr.rel (0) target = $region45
    $region44: #{tpu_custom_call.1} parent=1 // pred_region
      %1189 = dma.done [#allocation5], 256
    $region45: #{tpu_custom_call.1} parent=1 // pred_fallthru
      _
    %1190 = vsyncpa [#allocation4], 1
    %1191 = vsyncpa [#allocation7], 1
    %1192 = vsyncpa [#allocation5], 1

</llo_original>
